<compile_context>
chip_gen: v7x
topology: tpu7x:2x2x1
jax: 0.10.0
libtpu: 0.0.40
codegen_flags: <defaults>
</compile_context>

<pallas_src>
import jax
import jax.numpy as jnp
from jax.experimental import pallas as pl
from jax.experimental.pallas import tpu as pltpu  # noqa: F401  (TPU backend)


# --------------------------------------------------------------------------
# One-time weight folding: Conv1d / ConvTranspose1d -> dense matrices acting
# on channel-major flattened activations  x_flat[b, c*L + i] = x[b, c, i].
# (Runs in plain JAX at init; NOT in the forward hot path.  Built with exact
# elementwise select+sum so the folded weights are bit-identical to the
# original conv weights -- no matmul-precision rounding at init.)
# --------------------------------------------------------------------------
def conv1d_to_dense(w, l_in, stride, padding):
    """w: (Cout, Cin, K) PyTorch Conv1d weight -> M: (Cin*Lin, Cout*Lout)."""
    c_out, c_in, k = w.shape
    l_out = (l_in + 2 * padding - k) // stride + 1
    ii = jnp.arange(l_in)[None, :, None]
    jj = jnp.arange(l_out)[None, None, :]
    kk = jnp.arange(k)[:, None, None]
    sel = (ii == jj * stride + kk - padding).astype(w.dtype)        # (K, Lin, Lout)
    prod = w[:, :, :, None, None] * sel[None, None, :, :, :]        # (Cout,Cin,K,Lin,Lout)
    m = prod.sum(axis=2).transpose(1, 2, 0, 3)                      # (Cin,Lin,Cout,Lout)
    return m.reshape(c_in * l_in, c_out * l_out)


def conv_transpose1d_to_dense(w, l_in, stride, padding):
    """w: (Cin, Cout, K) PyTorch ConvTranspose1d weight -> M: (Cin*Lin, Cout*Lout)."""
    c_in, c_out, k = w.shape
    l_out = (l_in - 1) * stride - 2 * padding + k
    ii = jnp.arange(l_in)[None, :, None]
    jj = jnp.arange(l_out)[None, None, :]
    kk = jnp.arange(k)[:, None, None]
    sel = (jj == ii * stride + kk - padding).astype(w.dtype)        # (K, Lin, Lout)
    prod = w[:, :, :, None, None] * sel[None, None, :, :, :]        # (Cin,Cout,K,Lin,Lout)
    m = prod.sum(axis=2).transpose(0, 2, 1, 3)                      # (Cin,Lin,Cout,Lout)
    return m.reshape(c_in * l_in, c_out * l_out)


# --------------------------------------------------------------------------
# Deterministic parameter initialization (PyTorch-shaped weights)
# --------------------------------------------------------------------------
def _init_linear(key, in_dim, out_dim):
    k1, k2 = jax.random.split(key)
    bound = 1.0 / jnp.sqrt(in_dim)
    w = jax.random.uniform(k1, (in_dim, out_dim), jnp.float32, -bound, bound)
    b = jax.random.uniform(k2, (out_dim,), jnp.float32, -bound, bound)
    return w, b


def _init_conv(key, cin, cout, k):
    k1, k2 = jax.random.split(key)
    bound = 1.0 / jnp.sqrt(cin * k)
    w = jax.random.uniform(k1, (cout, cin, k), jnp.float32, -bound, bound)
    b = jax.random.uniform(k2, (cout,), jnp.float32, -bound, bound)
    return w, b


def _init_convT(key, cin, cout, k):
    k1, k2 = jax.random.split(key)
    bound = 1.0 / jnp.sqrt(cin * k)
    w = jax.random.uniform(k1, (cin, cout, k), jnp.float32, -bound, bound)
    b = jax.random.uniform(k2, (cout,), jnp.float32, -bound, bound)
    return w, b


def build_imatac_params(key, in_feature, num_components, cfg):
    hidden_feature = in_feature // 2
    fc, cl = cfg["fully_connect_layer"], cfg["conv_layer"]
    keys = iter(jax.random.split(key, 64))
    P = {}

    w1, b1 = _init_linear(next(keys), hidden_feature, fc["mlp"]["hidden_dim"])
    w2, b2 = _init_linear(next(keys), fc["mlp"]["hidden_dim"], fc["mlp"]["out_dim"])
    P["mlp"] = dict(w1=w1, b1=b1, w2=w2, b2=b2)

    w1, b1 = _init_linear(next(keys), fc["mlp"]["out_dim"], fc["classifier"]["hidden_dim"])
    w2, b2 = _init_linear(next(keys), fc["classifier"]["hidden_dim"], num_components)
    P["classifier"] = dict(w1=w1, b1=b1, w2=w2, b2=b2)

    w1, b1 = _init_linear(next(keys), fc["mlp"]["out_dim"], fc["upsample"]["hidden_dim"])
    w2, b2 = _init_linear(next(keys), fc["upsample"]["hidden_dim"], hidden_feature)
    P["upsample"] = dict(w1=w1, b1=b1, w2=w2, b2=b2)

    def enc_params(k, cin, cout):
        ka, kb = jax.random.split(k)
        w1, b1 = _init_conv(ka, cin, cout // 2, 4)        # stride-2 downsample conv
        w2, b2 = _init_conv(kb, cout // 2, cout, 3)       # kernel-3 refine conv
        return dict(w1=w1, b1=b1, w2=w2, b2=b2)

    def dec_params(k, cin, chid, cout):
        ka, kb = jax.random.split(k)
        w1, b1 = _init_conv(ka, cin, chid, 3)             # kernel-3 conv
        w2, b2 = _init_convT(kb, chid, cout, 4)           # stride-2 transposed conv
        return dict(w1=w1, b1=b1, w2=w2, b2=b2)

    P["encoder_b"] = enc_params(next(keys), cl["bottom_encoder"]["in_channel"],
                                cl["bottom_encoder"]["hidden_channel"])
    P["encoder_t"] = enc_params(next(keys), cl["top_encoder"]["hidden_channel"],
                                cl["top_encoder"]["out_channel"])
    P["decoder_t"] = dec_params(next(keys), cl["top_encoder"]["out_channel"],
                                cl["top_decoder"]["hidden_channel"],
                                cl["top_decoder"]["out_channel"])
    P["decoder"] = dec_params(next(keys),
                              cl["top_encoder"]["out_channel"] + cl["top_decoder"]["hidden_channel"],
                              cl["bottom_decoder"]["hidden_channel"],
                              cl["bottom_encoder"]["in_channel"])

    up_ch = cl["upsample_layer"]["channel"]
    w1, b1 = _init_conv(next(keys), cl["bottom_encoder"]["in_channel"], up_ch, 3)
    w2, b2 = _init_convT(next(keys), up_ch, up_ch, 3)
    P["upsample_t"] = dict(w1=w1, b1=b1, w2=w2, b2=b2)

    c = cl["conv_layer"]["channel"]
    cin = cl["bottom_encoder"]["hidden_channel"] + cl["top_decoder"]["out_channel"]
    w1, b1 = _init_conv(next(keys), cin, c, 1)
    w2, b2 = _init_conv(next(keys), c, c // 2, 1)
    w3, b3 = _init_conv(next(keys), c // 2, c // 2, 1)
    w4, b4 = _init_conv(next(keys), c // 2, 1, 1)
    P["conv"] = dict(w1=w1, b1=b1, w2=w2, b2=b2, w3=w3, b3=b3, w4=w4, b4=b4)
    return P


# --------------------------------------------------------------------------
# One-time preprocessing: fold every layer into kernel-ready dense matrices.
# --------------------------------------------------------------------------
def preprocess_params(P, in_feature, matmul_dtype=jnp.float32):
    L = in_feature
    Lh = L // 2
    Lq = L // 4
    F = {}

    def add(name, m, b):
        F["w_" + name] = m.astype(matmul_dtype)
        F["b_" + name] = jnp.asarray(b, jnp.float32).reshape(1, -1)

    def add_split(name, m, b, split_rows):
        # split the dense matrix so `concat([a, b], channel) @ M` becomes
        # `a @ M[:split] + b @ M[split:]` -- no in-kernel concatenate needed.
        F["wa_" + name] = m[:split_rows].astype(matmul_dtype)
        F["wb_" + name] = m[split_rows:].astype(matmul_dtype)
        F["b_" + name] = jnp.asarray(b, jnp.float32).reshape(1, -1)

    p = P["encoder_b"]
    add("enc_b1", conv1d_to_dense(p["w1"], L, 2, 1), jnp.repeat(p["b1"], Lh))
    add("enc_b2", conv1d_to_dense(p["w2"], Lh, 1, 1), jnp.repeat(p["b2"], Lh))
    p = P["encoder_t"]
    add("enc_t1", conv1d_to_dense(p["w1"], Lh, 2, 1), jnp.repeat(p["b1"], Lq))
    add("enc_t2", conv1d_to_dense(p["w2"], Lq, 1, 1), jnp.repeat(p["b2"], Lq))
    p = P["decoder_t"]
    add("dec_t1", conv1d_to_dense(p["w1"], Lq, 1, 1), jnp.repeat(p["b1"], Lq))
    add("dec_t2", conv_transpose1d_to_dense(p["w2"], Lq, 2, 1), jnp.repeat(p["b2"], Lh))

    pc = P["conv"]
    n_dec_t_ch = P["decoder_t"]["w2"].shape[1]     # top_decoder out_channel
    add_split("head1", conv1d_to_dense(pc["w1"], Lh, 1, 0),
              jnp.repeat(pc["b1"], Lh), n_dec_t_ch * Lh)
    add("head2", conv1d_to_dense(pc["w2"], Lh, 1, 0), jnp.repeat(pc["b2"], Lh))
    add("head3", conv1d_to_dense(pc["w3"], Lh, 1, 0), jnp.repeat(pc["b3"], Lh))
    add("head4", conv1d_to_dense(pc["w4"], Lh, 1, 0), jnp.repeat(pc["b4"], Lh))

    for src, dst in (("mlp", "mlp"), ("classifier", "cls"), ("upsample", "ups")):
        p = P[src]
        add(dst + "1", p["w1"], p["b1"])
        add(dst + "2", p["w2"], p["b2"])

    p = P["upsample_t"]
    add("upt1", conv1d_to_dense(p["w1"], Lh, 1, 1), jnp.repeat(p["b1"], Lh))
    add("upt2", conv_transpose1d_to_dense(p["w2"], Lh, 1, 1), jnp.repeat(p["b2"], Lh))

    p = P["decoder"]
    n_up_ch = P["upsample_t"]["w2"].shape[1]       # upsample_layer channel
    add_split("dec1", conv1d_to_dense(p["w1"], Lh, 1, 1),
              jnp.repeat(p["b1"], Lh), n_up_ch * Lh)
    add("dec2", conv_transpose1d_to_dense(p["w2"], Lh, 2, 1), jnp.repeat(p["b2"], L))
    return F


# --------------------------------------------------------------------------
# The single fused Pallas kernel: whole IMATAC forward in one body.
# Activations are (B, C*L) channel-major; every layer is dot + bias (+ ReLU).
# --------------------------------------------------------------------------
def _fused_kernel_factory(names, n_in):
    def kernel(*refs):
        r = dict(zip(names, refs[:n_in]))
        dec_ref, pred_ref = refs[n_in], refs[n_in + 1]

        def dense(h, name, relu):
            w = r["w_" + name][...]
            b = r["b_" + name][...]
            y = jnp.dot(h.astype(w.dtype), w,
                        preferred_element_type=jnp.float32) + b
            return jnp.maximum(y, 0.0) if relu else y

        def dense_cat2(h1, h2, name, relu):
            wa = r["wa_" + name][...]
            wb = r["wb_" + name][...]
            b = r["b_" + name][...]
            y = (jnp.dot(h1.astype(wa.dtype), wa, preferred_element_type=jnp.float32)
                 + jnp.dot(h2.astype(wb.dtype), wb, preferred_element_type=jnp.float32)
                 + b)
            return jnp.maximum(y, 0.0) if relu else y

        # dropout: Bernoulli keep mask, no rescale (matches random_noise()).
        x = r["x"][...] * r["mask"][...]

        # ---- encode ----
        h = dense(x, "enc_b1", True)
        enc_b = dense(h, "enc_b2", True)          # (B, Cb * L/2)
        h = dense(enc_b, "enc_t1", True)
        enc_t = dense(h, "enc_t2", True)          # (B, Ct * L/4)
        h = dense(enc_t, "dec_t1", True)
        dec_t = dense(h, "dec_t2", False)         # (B, Cdt * L/2)

        # ---- 1x1 conv head on cat([dec_t, enc_b], channel) ----
        h = dense_cat2(dec_t, enc_b, "head1", True)
        h = dense(h, "head2", True)
        h = dense(h, "head3", True)
        h = dense(h, "head4", False)              # (B, L/2)

        # ---- MLP / classifier / upsample MLP ----
        z = dense(h, "mlp1", True)
        z = dense(z, "mlp2", False)               # (B, mlp_out)
        p = dense(z, "cls1", True)
        pred_ref[...] = dense(p, "cls2", False).astype(pred_ref.dtype)
        u = dense(z, "ups1", True)
        u = dense(u, "ups2", False)               # (B, L/2)

        # ---- decode ----
        u = dense(u, "upt1", True)
        u = dense(u, "upt2", True)                # (B, up_ch * L/2)
        h = dense_cat2(u, enc_b, "dec1", True)
        dec_ref[...] = dense(h, "dec2", False).astype(dec_ref.dtype)

    return kernel


def imatac_forward_fused(x, mask, flat_params):
    """x, mask: (B, in_feature) f32 -> (dec: (B, in_feature), predict: (B, num_components))."""
    B, L = x.shape
    num_components = flat_params["w_cls2"].shape[1]
    names = ["x", "mask"] + list(flat_params.keys())
    arrays = [x, mask] + list(flat_params.values())
    kernel = _fused_kernel_factory(tuple(names), len(names))
    # Grid-free single invocation: every operand is a whole-array block that
    # Pallas places in VMEM (total footprint < 1 MiB), so the entire forward
    # runs from VMEM with a single kernel launch and a single HBM read/write
    # per array.
    dec, predict = pl.pallas_call(
        kernel,
        out_shape=(jax.ShapeDtypeStruct((B, L), jnp.float32),
                   jax.ShapeDtypeStruct((B, num_components), jnp.float32)),
    )(*arrays)
    return dec, predict


# --------------------------------------------------------------------------
# Pure-JAX reference (NOT Pallas, not the hot path) -- used only to verify
# the fused kernel numerically.  Mirrors the PyTorch layer semantics.
# --------------------------------------------------------------------------
_HI = jax.lax.Precision.HIGHEST


def _ref_linear(x, w, b, relu=False):
    y = jnp.dot(x, w, precision=_HI) + b[None, :]
    return jnp.maximum(y, 0.0) if relu else y


def _ref_conv1d(x, w, b, stride=1, padding=0, relu=False):
    B, Cin, L = x.shape
    Cout, _, K = w.shape
    xp = jnp.pad(x, ((0, 0), (0, 0), (padding, padding)))
    Lout = (L + 2 * padding - K) // stride + 1
    idx = (jnp.arange(Lout) * stride)[:, None] + jnp.arange(K)[None, :]
    patches = xp[:, :, idx]                                            # (B,Cin,Lout,K)
    patches = patches.transpose(0, 2, 1, 3).reshape(B * Lout, Cin * K)
    y = jnp.dot(patches, w.reshape(Cout, Cin * K).T, precision=_HI) + b[None, :]
    y = y.reshape(B, Lout, Cout).transpose(0, 2, 1)
    return jnp.maximum(y, 0.0) if relu else y


def _ref_conv_transpose1d(x, w, b, stride=1, padding=0, relu=False):
    B, Cin, L = x.shape
    _, Cout, K = w.shape
    if stride > 1:
        xd = jnp.zeros((B, Cin, (L - 1) * stride + 1), x.dtype)
        xd = xd.at[:, :, ::stride].set(x)
    else:
        xd = x
    w_conv = jnp.flip(w, axis=-1).transpose(1, 0, 2)                   # (Cout,Cin,K)
    return _ref_conv1d(xd, w_conv, b, stride=1, padding=K - 1 - padding, relu=relu)


def _ref_mlp(x2d, p):
    h = _ref_linear(x2d, p["w1"], p["b1"], relu=True)
    return _ref_linear(h, p["w2"], p["b2"], relu=False)


def imatac_forward_reference(x, mask, P):
    x = x * mask
    inp = x[:, None, :]
    pe = P["encoder_b"]
    h = _ref_conv1d(inp, pe["w1"], pe["b1"], stride=2, padding=1, relu=True)
    enc_b = _ref_conv1d(h, pe["w2"], pe["b2"], stride=1, padding=1, relu=True)
    pe = P["encoder_t"]
    h = _ref_conv1d(enc_b, pe["w1"], pe["b1"], stride=2, padding=1, relu=True)
    enc_t = _ref_conv1d(h, pe["w2"], pe["b2"], stride=1, padding=1, relu=True)
    pd = P["decoder_t"]
    h = _ref_conv1d(enc_t, pd["w1"], pd["b1"], stride=1, padding=1, relu=True)
    dec_t = _ref_conv_transpose1d(h, pd["w2"], pd["b2"], stride=2, padding=1, relu=False)

    pc = P["conv"]
    h = jnp.concatenate([dec_t, enc_b], axis=1)
    h = _ref_conv1d(h, pc["w1"], pc["b1"], relu=True)
    h = _ref_conv1d(h, pc["w2"], pc["b2"], relu=True)
    h = _ref_conv1d(h, pc["w3"], pc["b3"], relu=True)
    h = _ref_conv1d(h, pc["w4"], pc["b4"], relu=False)

    B = h.shape[0]
    z = _ref_mlp(h.reshape(B, -1), P["mlp"])
    predict = _ref_mlp(z, P["classifier"])
    u = _ref_mlp(z, P["upsample"])[:, None, :]

    pu = P["upsample_t"]
    up = _ref_conv1d(u, pu["w1"], pu["b1"], stride=1, padding=1, relu=True)
    up = _ref_conv_transpose1d(up, pu["w2"], pu["b2"], stride=1, padding=1, relu=True)
    enc = jnp.concatenate([up, enc_b], axis=1)
    pd = P["decoder"]
    h = _ref_conv1d(enc, pd["w1"], pd["b1"], stride=1, padding=1, relu=True)
    dec = _ref_conv_transpose1d(h, pd["w2"], pd["b2"], stride=2, padding=1, relu=False)
    return dec[:, 0, :], predict


# --------------------------------------------------------------------------
if __name__ == "__main__":
    in_feature = 16
    num_components = 30
    batch = 2
    dropout_rate = 0.1

    cfg = {
        "fully_connect_layer": {
            "mlp": {"hidden_dim": 32, "out_dim": 16},
            "classifier": {"hidden_dim": 32},
            "upsample": {"hidden_dim": 32},
        },
        "conv_layer": {
            "bottom_encoder": {"in_channel": 1, "hidden_channel": 8},
            "top_encoder": {"hidden_channel": 8, "out_channel": 16},
            "top_decoder": {"hidden_channel": 8, "out_channel": 8},
            "bottom_decoder": {"hidden_channel": 8},
            "upsample_layer": {"channel": 16},
            "conv_layer": {"channel": 8},
        },
    }

    root = jax.random.PRNGKey(0)
    k_param, k_data, k_noise = jax.random.split(root, 3)

    P = build_imatac_params(k_param, in_feature, num_components, cfg)
    # One-time folding of all conv/linear weights into kernel-ready matrices.
    # (Use matmul_dtype=jnp.bfloat16 on v6e/v7x for MXU throughput at scale;
    #  f32 here for parity with the float32 PyTorch reference.)
    F = preprocess_params(P, in_feature, matmul_dtype=jnp.float32)

    x = jax.random.normal(k_data, (batch, in_feature), jnp.float32)
    # random_noise(): Bernoulli keep-mask, intentionally NO 1/(1-p) rescale.
    mask = jax.random.bernoulli(k_noise, 1.0 - dropout_rate, x.shape).astype(jnp.float32)

    dec, predict = imatac_forward_fused(x, mask, F)
    dec = jax.block_until_ready(dec)
    predict = jax.block_until_ready(predict)

    assert dec.shape == (batch, in_feature), dec.shape
    assert predict.shape == (batch, num_components), predict.shape
    assert bool(jnp.all(jnp.isfinite(dec))) and bool(jnp.all(jnp.isfinite(predict)))

    # Numerical cross-check of the fused Pallas kernel vs a pure-JAX reference.
    dec_ref, pred_ref = imatac_forward_reference(x, mask, P)
    assert jnp.allclose(dec, dec_ref, rtol=1e-3, atol=1e-3), \
        float(jnp.max(jnp.abs(dec - dec_ref)))
    assert jnp.allclose(predict, pred_ref, rtol=1e-3, atol=1e-3), \
        float(jnp.max(jnp.abs(predict - pred_ref)))

    print("KERNEL_OK")
</pallas_src>

<mosaic_0001>
module attributes {stable_mosaic.version = 11 : i64} {
  func.func @kernel(%arg0: memref<2x16xf32, #tpu.memory_space<vmem>>, %arg1: memref<2x16xf32, #tpu.memory_space<vmem>>, %arg2: memref<16x32xf32, #tpu.memory_space<vmem>>, %arg3: memref<1x32xf32, #tpu.memory_space<vmem>>, %arg4: memref<32x64xf32, #tpu.memory_space<vmem>>, %arg5: memref<1x64xf32, #tpu.memory_space<vmem>>, %arg6: memref<64x32xf32, #tpu.memory_space<vmem>>, %arg7: memref<1x32xf32, #tpu.memory_space<vmem>>, %arg8: memref<32x64xf32, #tpu.memory_space<vmem>>, %arg9: memref<1x64xf32, #tpu.memory_space<vmem>>, %arg10: memref<64x32xf32, #tpu.memory_space<vmem>>, %arg11: memref<1x32xf32, #tpu.memory_space<vmem>>, %arg12: memref<32x64xf32, #tpu.memory_space<vmem>>, %arg13: memref<1x64xf32, #tpu.memory_space<vmem>>, %arg14: memref<64x64xf32, #tpu.memory_space<vmem>>, %arg15: memref<64x64xf32, #tpu.memory_space<vmem>>, %arg16: memref<1x64xf32, #tpu.memory_space<vmem>>, %arg17: memref<64x32xf32, #tpu.memory_space<vmem>>, %arg18: memref<1x32xf32, #tpu.memory_space<vmem>>, %arg19: memref<32x32xf32, #tpu.memory_space<vmem>>, %arg20: memref<1x32xf32, #tpu.memory_space<vmem>>, %arg21: memref<32x8xf32, #tpu.memory_space<vmem>>, %arg22: memref<1x8xf32, #tpu.memory_space<vmem>>, %arg23: memref<8x32xf32, #tpu.memory_space<vmem>>, %arg24: memref<1x32xf32, #tpu.memory_space<vmem>>, %arg25: memref<32x16xf32, #tpu.memory_space<vmem>>, %arg26: memref<1x16xf32, #tpu.memory_space<vmem>>, %arg27: memref<16x32xf32, #tpu.memory_space<vmem>>, %arg28: memref<1x32xf32, #tpu.memory_space<vmem>>, %arg29: memref<32x30xf32, #tpu.memory_space<vmem>>, %arg30: memref<1x30xf32, #tpu.memory_space<vmem>>, %arg31: memref<16x32xf32, #tpu.memory_space<vmem>>, %arg32: memref<1x32xf32, #tpu.memory_space<vmem>>, %arg33: memref<32x8xf32, #tpu.memory_space<vmem>>, %arg34: memref<1x8xf32, #tpu.memory_space<vmem>>, %arg35: memref<8x128xf32, #tpu.memory_space<vmem>>, %arg36: memref<1x128xf32, #tpu.memory_space<vmem>>, %arg37: memref<128x128xf32, #tpu.memory_space<vmem>>, %arg38: memref<1x128xf32, #tpu.memory_space<vmem>>, %arg39: memref<128x64xf32, #tpu.memory_space<vmem>>, %arg40: memref<64x64xf32, #tpu.memory_space<vmem>>, %arg41: memref<1x64xf32, #tpu.memory_space<vmem>>, %arg42: memref<64x16xf32, #tpu.memory_space<vmem>>, %arg43: memref<1x16xf32, #tpu.memory_space<vmem>>, %arg44: memref<2x16xf32, #tpu.memory_space<vmem>>, %arg45: memref<2x30xf32, #tpu.memory_space<vmem>>) attributes {dimension_semantics = [], scalar_prefetch = 0 : i64, scratch_operands = 0 : i64, tpu.core_type = #tpu.core_type<tc>} {
    %c0 = arith.constant 0 : index
    %c0_0 = arith.constant 0 : index
    %0 = vector.load %arg0[%c0, %c0_0] : memref<2x16xf32, #tpu.memory_space<vmem>>, vector<2x16xf32>
    %c0_1 = arith.constant 0 : index
    %c0_2 = arith.constant 0 : index
    %1 = vector.load %arg1[%c0_1, %c0_2] : memref<2x16xf32, #tpu.memory_space<vmem>>, vector<2x16xf32>
    %2 = arith.mulf %0, %1 : vector<2x16xf32>
    %c0_3 = arith.constant 0 : index
    %c0_4 = arith.constant 0 : index
    %3 = vector.load %arg2[%c0_3, %c0_4] : memref<16x32xf32, #tpu.memory_space<vmem>>, vector<16x32xf32>
    %c0_5 = arith.constant 0 : index
    %c0_6 = arith.constant 0 : index
    %4 = vector.load %arg3[%c0_5, %c0_6] : memref<1x32xf32, #tpu.memory_space<vmem>>, vector<1x32xf32>
    %cst = arith.constant dense<0.000000e+00> : vector<2x32xf32>
    %5 = tpu.matmul %2, %3, %cst {dimension_numbers = #tpu.dot_dimension_numbers<[1], [0], [0], [1], [0, 0, 1, 1], [], []>} : vector<2x16xf32>, vector<16x32xf32>, vector<2x32xf32> -> vector<2x32xf32>
    %6 = vector.broadcast %4 : vector<1x32xf32> to vector<2x32xf32>
    %7 = arith.addf %5, %6 : vector<2x32xf32>
    %cst_7 = arith.constant 0.000000e+00 : f32
    %8 = vector.broadcast %cst_7 : f32 to vector<2x32xf32>
    %9 = arith.maximumf %7, %8 : vector<2x32xf32>
    %c0_8 = arith.constant 0 : index
    %c0_9 = arith.constant 0 : index
    %10 = vector.load %arg4[%c0_8, %c0_9] : memref<32x64xf32, #tpu.memory_space<vmem>>, vector<32x64xf32>
    %c0_10 = arith.constant 0 : index
    %c0_11 = arith.constant 0 : index
    %11 = vector.load %arg5[%c0_10, %c0_11] : memref<1x64xf32, #tpu.memory_space<vmem>>, vector<1x64xf32>
    %cst_12 = arith.constant dense<0.000000e+00> : vector<2x64xf32>
    %12 = tpu.matmul %9, %10, %cst_12 {dimension_numbers = #tpu.dot_dimension_numbers<[1], [0], [0], [1], [0, 0, 1, 1], [], []>} : vector<2x32xf32>, vector<32x64xf32>, vector<2x64xf32> -> vector<2x64xf32>
    %13 = vector.broadcast %11 : vector<1x64xf32> to vector<2x64xf32>
    %14 = arith.addf %12, %13 : vector<2x64xf32>
    %cst_13 = arith.constant 0.000000e+00 : f32
    %15 = vector.broadcast %cst_13 : f32 to vector<2x64xf32>
    %16 = arith.maximumf %14, %15 : vector<2x64xf32>
    %c0_14 = arith.constant 0 : index
    %c0_15 = arith.constant 0 : index
    %17 = vector.load %arg6[%c0_14, %c0_15] : memref<64x32xf32, #tpu.memory_space<vmem>>, vector<64x32xf32>
    %c0_16 = arith.constant 0 : index
    %c0_17 = arith.constant 0 : index
    %18 = vector.load %arg7[%c0_16, %c0_17] : memref<1x32xf32, #tpu.memory_space<vmem>>, vector<1x32xf32>
    %cst_18 = arith.constant dense<0.000000e+00> : vector<2x32xf32>
    %19 = tpu.matmul %16, %17, %cst_18 {dimension_numbers = #tpu.dot_dimension_numbers<[1], [0], [0], [1], [0, 0, 1, 1], [], []>} : vector<2x64xf32>, vector<64x32xf32>, vector<2x32xf32> -> vector<2x32xf32>
    %20 = vector.broadcast %18 : vector<1x32xf32> to vector<2x32xf32>
    %21 = arith.addf %19, %20 : vector<2x32xf32>
    %cst_19 = arith.constant 0.000000e+00 : f32
    %22 = vector.broadcast %cst_19 : f32 to vector<2x32xf32>
    %23 = arith.maximumf %21, %22 : vector<2x32xf32>
    %c0_20 = arith.constant 0 : index
    %c0_21 = arith.constant 0 : index
    %24 = vector.load %arg8[%c0_20, %c0_21] : memref<32x64xf32, #tpu.memory_space<vmem>>, vector<32x64xf32>
    %c0_22 = arith.constant 0 : index
    %c0_23 = arith.constant 0 : index
    %25 = vector.load %arg9[%c0_22, %c0_23] : memref<1x64xf32, #tpu.memory_space<vmem>>, vector<1x64xf32>
    %cst_24 = arith.constant dense<0.000000e+00> : vector<2x64xf32>
    %26 = tpu.matmul %23, %24, %cst_24 {dimension_numbers = #tpu.dot_dimension_numbers<[1], [0], [0], [1], [0, 0, 1, 1], [], []>} : vector<2x32xf32>, vector<32x64xf32>, vector<2x64xf32> -> vector<2x64xf32>
    %27 = vector.broadcast %25 : vector<1x64xf32> to vector<2x64xf32>
    %28 = arith.addf %26, %27 : vector<2x64xf32>
    %cst_25 = arith.constant 0.000000e+00 : f32
    %29 = vector.broadcast %cst_25 : f32 to vector<2x64xf32>
    %30 = arith.maximumf %28, %29 : vector<2x64xf32>
    %c0_26 = arith.constant 0 : index
    %c0_27 = arith.constant 0 : index
    %31 = vector.load %arg10[%c0_26, %c0_27] : memref<64x32xf32, #tpu.memory_space<vmem>>, vector<64x32xf32>
    %c0_28 = arith.constant 0 : index
    %c0_29 = arith.constant 0 : index
    %32 = vector.load %arg11[%c0_28, %c0_29] : memref<1x32xf32, #tpu.memory_space<vmem>>, vector<1x32xf32>
    %cst_30 = arith.constant dense<0.000000e+00> : vector<2x32xf32>
    %33 = tpu.matmul %30, %31, %cst_30 {dimension_numbers = #tpu.dot_dimension_numbers<[1], [0], [0], [1], [0, 0, 1, 1], [], []>} : vector<2x64xf32>, vector<64x32xf32>, vector<2x32xf32> -> vector<2x32xf32>
    %34 = vector.broadcast %32 : vector<1x32xf32> to vector<2x32xf32>
    %35 = arith.addf %33, %34 : vector<2x32xf32>
    %cst_31 = arith.constant 0.000000e+00 : f32
    %36 = vector.broadcast %cst_31 : f32 to vector<2x32xf32>
    %37 = arith.maximumf %35, %36 : vector<2x32xf32>
    %c0_32 = arith.constant 0 : index
    %c0_33 = arith.constant 0 : index
    %38 = vector.load %arg12[%c0_32, %c0_33] : memref<32x64xf32, #tpu.memory_space<vmem>>, vector<32x64xf32>
    %c0_34 = arith.constant 0 : index
    %c0_35 = arith.constant 0 : index
    %39 = vector.load %arg13[%c0_34, %c0_35] : memref<1x64xf32, #tpu.memory_space<vmem>>, vector<1x64xf32>
    %cst_36 = arith.constant dense<0.000000e+00> : vector<2x64xf32>
    %40 = tpu.matmul %37, %38, %cst_36 {dimension_numbers = #tpu.dot_dimension_numbers<[1], [0], [0], [1], [0, 0, 1, 1], [], []>} : vector<2x32xf32>, vector<32x64xf32>, vector<2x64xf32> -> vector<2x64xf32>
    %41 = vector.broadcast %39 : vector<1x64xf32> to vector<2x64xf32>
    %42 = arith.addf %40, %41 : vector<2x64xf32>
    %c0_37 = arith.constant 0 : index
    %c0_38 = arith.constant 0 : index
    %43 = vector.load %arg14[%c0_37, %c0_38] : memref<64x64xf32, #tpu.memory_space<vmem>>, vector<64x64xf32>
    %c0_39 = arith.constant 0 : index
    %c0_40 = arith.constant 0 : index
    %44 = vector.load %arg15[%c0_39, %c0_40] : memref<64x64xf32, #tpu.memory_space<vmem>>, vector<64x64xf32>
    %c0_41 = arith.constant 0 : index
    %c0_42 = arith.constant 0 : index
    %45 = vector.load %arg16[%c0_41, %c0_42] : memref<1x64xf32, #tpu.memory_space<vmem>>, vector<1x64xf32>
    %cst_43 = arith.constant dense<0.000000e+00> : vector<2x64xf32>
    %46 = tpu.matmul %42, %43, %cst_43 {dimension_numbers = #tpu.dot_dimension_numbers<[1], [0], [0], [1], [0, 0, 1, 1], [], []>} : vector<2x64xf32>, vector<64x64xf32>, vector<2x64xf32> -> vector<2x64xf32>
    %cst_44 = arith.constant dense<0.000000e+00> : vector<2x64xf32>
    %47 = tpu.matmul %16, %44, %cst_44 {dimension_numbers = #tpu.dot_dimension_numbers<[1], [0], [0], [1], [0, 0, 1, 1], [], []>} : vector<2x64xf32>, vector<64x64xf32>, vector<2x64xf32> -> vector<2x64xf32>
    %48 = arith.addf %46, %47 : vector<2x64xf32>
    %49 = vector.broadcast %45 : vector<1x64xf32> to vector<2x64xf32>
    %50 = arith.addf %48, %49 : vector<2x64xf32>
    %cst_45 = arith.constant 0.000000e+00 : f32
    %51 = vector.broadcast %cst_45 : f32 to vector<2x64xf32>
    %52 = arith.maximumf %50, %51 : vector<2x64xf32>
    %c0_46 = arith.constant 0 : index
    %c0_47 = arith.constant 0 : index
    %53 = vector.load %arg17[%c0_46, %c0_47] : memref<64x32xf32, #tpu.memory_space<vmem>>, vector<64x32xf32>
    %c0_48 = arith.constant 0 : index
    %c0_49 = arith.constant 0 : index
    %54 = vector.load %arg18[%c0_48, %c0_49] : memref<1x32xf32, #tpu.memory_space<vmem>>, vector<1x32xf32>
    %cst_50 = arith.constant dense<0.000000e+00> : vector<2x32xf32>
    %55 = tpu.matmul %52, %53, %cst_50 {dimension_numbers = #tpu.dot_dimension_numbers<[1], [0], [0], [1], [0, 0, 1, 1], [], []>} : vector<2x64xf32>, vector<64x32xf32>, vector<2x32xf32> -> vector<2x32xf32>
    %56 = vector.broadcast %54 : vector<1x32xf32> to vector<2x32xf32>
    %57 = arith.addf %55, %56 : vector<2x32xf32>
    %cst_51 = arith.constant 0.000000e+00 : f32
    %58 = vector.broadcast %cst_51 : f32 to vector<2x32xf32>
    %59 = arith.maximumf %57, %58 : vector<2x32xf32>
    %c0_52 = arith.constant 0 : index
    %c0_53 = arith.constant 0 : index
    %60 = vector.load %arg19[%c0_52, %c0_53] : memref<32x32xf32, #tpu.memory_space<vmem>>, vector<32x32xf32>
    %c0_54 = arith.constant 0 : index
    %c0_55 = arith.constant 0 : index
    %61 = vector.load %arg20[%c0_54, %c0_55] : memref<1x32xf32, #tpu.memory_space<vmem>>, vector<1x32xf32>
    %cst_56 = arith.constant dense<0.000000e+00> : vector<2x32xf32>
    %62 = tpu.matmul %59, %60, %cst_56 {dimension_numbers = #tpu.dot_dimension_numbers<[1], [0], [0], [1], [0, 0, 1, 1], [], []>} : vector<2x32xf32>, vector<32x32xf32>, vector<2x32xf32> -> vector<2x32xf32>
    %63 = vector.broadcast %61 : vector<1x32xf32> to vector<2x32xf32>
    %64 = arith.addf %62, %63 : vector<2x32xf32>
    %cst_57 = arith.constant 0.000000e+00 : f32
    %65 = vector.broadcast %cst_57 : f32 to vector<2x32xf32>
    %66 = arith.maximumf %64, %65 : vector<2x32xf32>
    %c0_58 = arith.constant 0 : index
    %c0_59 = arith.constant 0 : index
    %67 = vector.load %arg21[%c0_58, %c0_59] : memref<32x8xf32, #tpu.memory_space<vmem>>, vector<32x8xf32>
    %c0_60 = arith.constant 0 : index
    %c0_61 = arith.constant 0 : index
    %68 = vector.load %arg22[%c0_60, %c0_61] : memref<1x8xf32, #tpu.memory_space<vmem>>, vector<1x8xf32>
    %cst_62 = arith.constant dense<0.000000e+00> : vector<2x8xf32>
    %69 = tpu.matmul %66, %67, %cst_62 {dimension_numbers = #tpu.dot_dimension_numbers<[1], [0], [0], [1], [0, 0, 1, 1], [], []>} : vector<2x32xf32>, vector<32x8xf32>, vector<2x8xf32> -> vector<2x8xf32>
    %70 = vector.broadcast %68 : vector<1x8xf32> to vector<2x8xf32>
    %71 = arith.addf %69, %70 : vector<2x8xf32>
    %c0_63 = arith.constant 0 : index
    %c0_64 = arith.constant 0 : index
    %72 = vector.load %arg23[%c0_63, %c0_64] : memref<8x32xf32, #tpu.memory_space<vmem>>, vector<8x32xf32>
    %c0_65 = arith.constant 0 : index
    %c0_66 = arith.constant 0 : index
    %73 = vector.load %arg24[%c0_65, %c0_66] : memref<1x32xf32, #tpu.memory_space<vmem>>, vector<1x32xf32>
    %cst_67 = arith.constant dense<0.000000e+00> : vector<2x32xf32>
    %74 = tpu.matmul %71, %72, %cst_67 {dimension_numbers = #tpu.dot_dimension_numbers<[1], [0], [0], [1], [0, 0, 1, 1], [], []>} : vector<2x8xf32>, vector<8x32xf32>, vector<2x32xf32> -> vector<2x32xf32>
    %75 = vector.broadcast %73 : vector<1x32xf32> to vector<2x32xf32>
    %76 = arith.addf %74, %75 : vector<2x32xf32>
    %cst_68 = arith.constant 0.000000e+00 : f32
    %77 = vector.broadcast %cst_68 : f32 to vector<2x32xf32>
    %78 = arith.maximumf %76, %77 : vector<2x32xf32>
    %c0_69 = arith.constant 0 : index
    %c0_70 = arith.constant 0 : index
    %79 = vector.load %arg25[%c0_69, %c0_70] : memref<32x16xf32, #tpu.memory_space<vmem>>, vector<32x16xf32>
    %c0_71 = arith.constant 0 : index
    %c0_72 = arith.constant 0 : index
    %80 = vector.load %arg26[%c0_71, %c0_72] : memref<1x16xf32, #tpu.memory_space<vmem>>, vector<1x16xf32>
    %cst_73 = arith.constant dense<0.000000e+00> : vector<2x16xf32>
    %81 = tpu.matmul %78, %79, %cst_73 {dimension_numbers = #tpu.dot_dimension_numbers<[1], [0], [0], [1], [0, 0, 1, 1], [], []>} : vector<2x32xf32>, vector<32x16xf32>, vector<2x16xf32> -> vector<2x16xf32>
    %82 = vector.broadcast %80 : vector<1x16xf32> to vector<2x16xf32>
    %83 = arith.addf %81, %82 : vector<2x16xf32>
    %c0_74 = arith.constant 0 : index
    %c0_75 = arith.constant 0 : index
    %84 = vector.load %arg27[%c0_74, %c0_75] : memref<16x32xf32, #tpu.memory_space<vmem>>, vector<16x32xf32>
    %c0_76 = arith.constant 0 : index
    %c0_77 = arith.constant 0 : index
    %85 = vector.load %arg28[%c0_76, %c0_77] : memref<1x32xf32, #tpu.memory_space<vmem>>, vector<1x32xf32>
    %cst_78 = arith.constant dense<0.000000e+00> : vector<2x32xf32>
    %86 = tpu.matmul %83, %84, %cst_78 {dimension_numbers = #tpu.dot_dimension_numbers<[1], [0], [0], [1], [0, 0, 1, 1], [], []>} : vector<2x16xf32>, vector<16x32xf32>, vector<2x32xf32> -> vector<2x32xf32>
    %87 = vector.broadcast %85 : vector<1x32xf32> to vector<2x32xf32>
    %88 = arith.addf %86, %87 : vector<2x32xf32>
    %cst_79 = arith.constant 0.000000e+00 : f32
    %89 = vector.broadcast %cst_79 : f32 to vector<2x32xf32>
    %90 = arith.maximumf %88, %89 : vector<2x32xf32>
    %c0_80 = arith.constant 0 : index
    %c0_81 = arith.constant 0 : index
    %91 = vector.load %arg29[%c0_80, %c0_81] : memref<32x30xf32, #tpu.memory_space<vmem>>, vector<32x30xf32>
    %c0_82 = arith.constant 0 : index
    %c0_83 = arith.constant 0 : index
    %92 = vector.load %arg30[%c0_82, %c0_83] : memref<1x30xf32, #tpu.memory_space<vmem>>, vector<1x30xf32>
    %cst_84 = arith.constant dense<0.000000e+00> : vector<2x30xf32>
    %93 = tpu.matmul %90, %91, %cst_84 {dimension_numbers = #tpu.dot_dimension_numbers<[1], [0], [0], [1], [0, 0, 1, 1], [], []>} : vector<2x32xf32>, vector<32x30xf32>, vector<2x30xf32> -> vector<2x30xf32>
    %94 = vector.broadcast %92 : vector<1x30xf32> to vector<2x30xf32>
    %95 = arith.addf %93, %94 : vector<2x30xf32>
    %c0_85 = arith.constant 0 : index
    %c0_86 = arith.constant 0 : index
    %96 = vector.load %arg45[%c0_85, %c0_86] : memref<2x30xf32, #tpu.memory_space<vmem>>, vector<2x30xf32>
    tpu.vector_store %arg45[%c0_85, %c0_86], %95 {strides = array<i32>} : memref<2x30xf32, #tpu.memory_space<vmem>>, vector<2x30xf32>,
    %c0_87 = arith.constant 0 : index
    %c0_88 = arith.constant 0 : index
    %97 = vector.load %arg31[%c0_87, %c0_88] : memref<16x32xf32, #tpu.memory_space<vmem>>, vector<16x32xf32>
    %c0_89 = arith.constant 0 : index
    %c0_90 = arith.constant 0 : index
    %98 = vector.load %arg32[%c0_89, %c0_90] : memref<1x32xf32, #tpu.memory_space<vmem>>, vector<1x32xf32>
    %cst_91 = arith.constant dense<0.000000e+00> : vector<2x32xf32>
    %99 = tpu.matmul %83, %97, %cst_91 {dimension_numbers = #tpu.dot_dimension_numbers<[1], [0], [0], [1], [0, 0, 1, 1], [], []>} : vector<2x16xf32>, vector<16x32xf32>, vector<2x32xf32> -> vector<2x32xf32>
    %100 = vector.broadcast %98 : vector<1x32xf32> to vector<2x32xf32>
    %101 = arith.addf %99, %100 : vector<2x32xf32>
    %cst_92 = arith.constant 0.000000e+00 : f32
    %102 = vector.broadcast %cst_92 : f32 to vector<2x32xf32>
    %103 = arith.maximumf %101, %102 : vector<2x32xf32>
    %c0_93 = arith.constant 0 : index
    %c0_94 = arith.constant 0 : index
    %104 = vector.load %arg33[%c0_93, %c0_94] : memref<32x8xf32, #tpu.memory_space<vmem>>, vector<32x8xf32>
    %c0_95 = arith.constant 0 : index
    %c0_96 = arith.constant 0 : index
    %105 = vector.load %arg34[%c0_95, %c0_96] : memref<1x8xf32, #tpu.memory_space<vmem>>, vector<1x8xf32>
    %cst_97 = arith.constant dense<0.000000e+00> : vector<2x8xf32>
    %106 = tpu.matmul %103, %104, %cst_97 {dimension_numbers = #tpu.dot_dimension_numbers<[1], [0], [0], [1], [0, 0, 1, 1], [], []>} : vector<2x32xf32>, vector<32x8xf32>, vector<2x8xf32> -> vector<2x8xf32>
    %107 = vector.broadcast %105 : vector<1x8xf32> to vector<2x8xf32>
    %108 = arith.addf %106, %107 : vector<2x8xf32>
    %c0_98 = arith.constant 0 : index
    %c0_99 = arith.constant 0 : index
    %109 = vector.load %arg35[%c0_98, %c0_99] : memref<8x128xf32, #tpu.memory_space<vmem>>, vector<8x128xf32>
    %c0_100 = arith.constant 0 : index
    %c0_101 = arith.constant 0 : index
    %110 = vector.load %arg36[%c0_100, %c0_101] : memref<1x128xf32, #tpu.memory_space<vmem>>, vector<1x128xf32>
    %cst_102 = arith.constant dense<0.000000e+00> : vector<2x128xf32>
    %111 = tpu.matmul %108, %109, %cst_102 {dimension_numbers = #tpu.dot_dimension_numbers<[1], [0], [0], [1], [0, 0, 1, 1], [], []>} : vector<2x8xf32>, vector<8x128xf32>, vector<2x128xf32> -> vector<2x128xf32>
    %112 = vector.broadcast %110 : vector<1x128xf32> to vector<2x128xf32>
    %113 = arith.addf %111, %112 : vector<2x128xf32>
    %cst_103 = arith.constant 0.000000e+00 : f32
    %114 = vector.broadcast %cst_103 : f32 to vector<2x128xf32>
    %115 = arith.maximumf %113, %114 : vector<2x128xf32>
    %c0_104 = arith.constant 0 : index
    %c0_105 = arith.constant 0 : index
    %116 = vector.load %arg37[%c0_104, %c0_105] : memref<128x128xf32, #tpu.memory_space<vmem>>, vector<128x128xf32>
    %c0_106 = arith.constant 0 : index
    %c0_107 = arith.constant 0 : index
    %117 = vector.load %arg38[%c0_106, %c0_107] : memref<1x128xf32, #tpu.memory_space<vmem>>, vector<1x128xf32>
    %cst_108 = arith.constant dense<0.000000e+00> : vector<2x128xf32>
    %118 = tpu.matmul %115, %116, %cst_108 {dimension_numbers = #tpu.dot_dimension_numbers<[1], [0], [0], [1], [0, 0, 1, 1], [], []>} : vector<2x128xf32>, vector<128x128xf32>, vector<2x128xf32> -> vector<2x128xf32>
    %119 = vector.broadcast %117 : vector<1x128xf32> to vector<2x128xf32>
    %120 = arith.addf %118, %119 : vector<2x128xf32>
    %cst_109 = arith.constant 0.000000e+00 : f32
    %121 = vector.broadcast %cst_109 : f32 to vector<2x128xf32>
    %122 = arith.maximumf %120, %121 : vector<2x128xf32>
    %c0_110 = arith.constant 0 : index
    %c0_111 = arith.constant 0 : index
    %123 = vector.load %arg39[%c0_110, %c0_111] : memref<128x64xf32, #tpu.memory_space<vmem>>, vector<128x64xf32>
    %c0_112 = arith.constant 0 : index
    %c0_113 = arith.constant 0 : index
    %124 = vector.load %arg40[%c0_112, %c0_113] : memref<64x64xf32, #tpu.memory_space<vmem>>, vector<64x64xf32>
    %c0_114 = arith.constant 0 : index
    %c0_115 = arith.constant 0 : index
    %125 = vector.load %arg41[%c0_114, %c0_115] : memref<1x64xf32, #tpu.memory_space<vmem>>, vector<1x64xf32>
    %cst_116 = arith.constant dense<0.000000e+00> : vector<2x64xf32>
    %126 = tpu.matmul %122, %123, %cst_116 {dimension_numbers = #tpu.dot_dimension_numbers<[1], [0], [0], [1], [0, 0, 1, 1], [], []>} : vector<2x128xf32>, vector<128x64xf32>, vector<2x64xf32> -> vector<2x64xf32>
    %cst_117 = arith.constant dense<0.000000e+00> : vector<2x64xf32>
    %127 = tpu.matmul %16, %124, %cst_117 {dimension_numbers = #tpu.dot_dimension_numbers<[1], [0], [0], [1], [0, 0, 1, 1], [], []>} : vector<2x64xf32>, vector<64x64xf32>, vector<2x64xf32> -> vector<2x64xf32>
    %128 = arith.addf %126, %127 : vector<2x64xf32>
    %129 = vector.broadcast %125 : vector<1x64xf32> to vector<2x64xf32>
    %130 = arith.addf %128, %129 : vector<2x64xf32>
    %cst_118 = arith.constant 0.000000e+00 : f32
    %131 = vector.broadcast %cst_118 : f32 to vector<2x64xf32>
    %132 = arith.maximumf %130, %131 : vector<2x64xf32>
    %c0_119 = arith.constant 0 : index
    %c0_120 = arith.constant 0 : index
    %133 = vector.load %arg42[%c0_119, %c0_120] : memref<64x16xf32, #tpu.memory_space<vmem>>, vector<64x16xf32>
    %c0_121 = arith.constant 0 : index
    %c0_122 = arith.constant 0 : index
    %134 = vector.load %arg43[%c0_121, %c0_122] : memref<1x16xf32, #tpu.memory_space<vmem>>, vector<1x16xf32>
    %cst_123 = arith.constant dense<0.000000e+00> : vector<2x16xf32>
    %135 = tpu.matmul %132, %133, %cst_123 {dimension_numbers = #tpu.dot_dimension_numbers<[1], [0], [0], [1], [0, 0, 1, 1], [], []>} : vector<2x64xf32>, vector<64x16xf32>, vector<2x16xf32> -> vector<2x16xf32>
    %136 = vector.broadcast %134 : vector<1x16xf32> to vector<2x16xf32>
    %137 = arith.addf %135, %136 : vector<2x16xf32>
    %c0_124 = arith.constant 0 : index
    %c0_125 = arith.constant 0 : index
    %138 = vector.load %arg44[%c0_124, %c0_125] : memref<2x16xf32, #tpu.memory_space<vmem>>, vector<2x16xf32>
    tpu.vector_store %arg44[%c0_124, %c0_125], %137 {strides = array<i32>} : memref<2x16xf32, #tpu.memory_space<vmem>>, vector<2x16xf32>,
    return
  }
}

</mosaic_0001>

<llo_original>
// kernel: tpu_custom_call.1
$region0: #{tpu_custom_call.1}
  #allocation0 [shape = 'u32[]', space=smem, size = 0x4, offset = 0x4, fixed_abs, tag = 'smem constant byte address 0x4 - core index']
  #allocation1 [shape = 'u32[144,128]{1,0:T(1,128)}', space=vmem, size = 0x12000, scoped, tag = 'internal scratch']
  %s0 = inlined_call_operand.smem [shape: u32[46], index: -1, kind: input, shape index: {}]
  %s1 = sld [smem:[%s0]]
  %s2 = scalar_lea.smem %s0, 1
  %s3 = sld [smem:[%s2]]
  %s4 = scalar_lea.smem %s0, 2
  %s5 = sld [smem:[%s4]]
  %s6 = scalar_lea.smem %s0, 3
  %s7 = sld [smem:[%s6]]
  %s8 = scalar_lea.smem %s0, 4
  %s9 = sld [smem:[%s8]]
  %s10 = scalar_lea.smem %s0, 5
  %s11 = sld [smem:[%s10]]
  %s12 = scalar_lea.smem %s0, 6
  %s13 = sld [smem:[%s12]]
  %s14 = scalar_lea.smem %s0, 7
  %s15 = sld [smem:[%s14]]
  %s16 = scalar_lea.smem %s0, 8
  %s17 = sld [smem:[%s16]]
  %s18 = scalar_lea.smem %s0, 9
  %s19 = sld [smem:[%s18]]
  %s20 = scalar_lea.smem %s0, 10
  %s21 = sld [smem:[%s20]]
  %s22 = scalar_lea.smem %s0, 11
  %s23 = sld [smem:[%s22]]
  %s24 = scalar_lea.smem %s0, 12
  %s25 = sld [smem:[%s24]]
  %s26 = scalar_lea.smem %s0, 13
  %s27 = sld [smem:[%s26]]
  %s28 = scalar_lea.smem %s0, 14
  %s29 = sld [smem:[%s28]]
  %s30 = scalar_lea.smem %s0, 15
  %s31 = sld [smem:[%s30]]
  %s32 = scalar_lea.smem %s0, 16
  %s33 = sld [smem:[%s32]]
  %s34 = scalar_lea.smem %s0, 17
  %s35 = sld [smem:[%s34]]
  %s36 = scalar_lea.smem %s0, 18
  %s37 = sld [smem:[%s36]]
  %s38 = scalar_lea.smem %s0, 19
  %s39 = sld [smem:[%s38]]
  %s40 = scalar_lea.smem %s0, 20
  %s41 = sld [smem:[%s40]]
  %s42 = scalar_lea.smem %s0, 21
  %s43 = sld [smem:[%s42]]
  %s44 = scalar_lea.smem %s0, 22
  %s45 = sld [smem:[%s44]]
  %s46 = scalar_lea.smem %s0, 23
  %s47 = sld [smem:[%s46]]
  %s48 = scalar_lea.smem %s0, 24
  %s49 = sld [smem:[%s48]]
  %s50 = scalar_lea.smem %s0, 25
  %s51 = sld [smem:[%s50]]
  %s52 = scalar_lea.smem %s0, 26
  %s53 = sld [smem:[%s52]]
  %s54 = scalar_lea.smem %s0, 27
  %s55 = sld [smem:[%s54]]
  %s56 = scalar_lea.smem %s0, 28
  %s57 = sld [smem:[%s56]]
  %s58 = scalar_lea.smem %s0, 29
  %s59 = sld [smem:[%s58]]
  %s60 = scalar_lea.smem %s0, 30
  %s61 = sld [smem:[%s60]]
  %s62 = scalar_lea.smem %s0, 31
  %s63 = sld [smem:[%s62]]
  %s64 = scalar_lea.smem %s0, 32
  %s65 = sld [smem:[%s64]]
  %s66 = scalar_lea.smem %s0, 33
  %s67 = sld [smem:[%s66]]
  %s68 = scalar_lea.smem %s0, 34
  %s69 = sld [smem:[%s68]]
  %s70 = scalar_lea.smem %s0, 35
  %s71 = sld [smem:[%s70]]
  %s72 = scalar_lea.smem %s0, 36
  %s73 = sld [smem:[%s72]]
  %s74 = scalar_lea.smem %s0, 37
  %s75 = sld [smem:[%s74]]
  %s76 = scalar_lea.smem %s0, 38
  %s77 = sld [smem:[%s76]]
  %s78 = scalar_lea.smem %s0, 39
  %s79 = sld [smem:[%s78]]
  %s80 = scalar_lea.smem %s0, 40
  %s81 = sld [smem:[%s80]]
  %s82 = scalar_lea.smem %s0, 41
  %s83 = sld [smem:[%s82]]
  %s84 = scalar_lea.smem %s0, 42
  %s85 = sld [smem:[%s84]]
  %s86 = scalar_lea.smem %s0, 43
  %s87 = sld [smem:[%s86]]
  %s88 = scalar_lea.smem %s0, 44
  %s89 = sld [smem:[%s88]]
  %s90 = scalar_lea.smem %s0, 45
  %s91 = sld [smem:[%s90]]
  %92 = xla_tuple %s89, %s91
  %s93 = sld [smem:[#allocation0]]
  $region230: #{tpu_custom_call.1} parent=0
    _
  %s95 = ssub.s32 1, %s93
  %s96 = scalar_select 0, %s95, %s93
  $region1: #{tpu_custom_call.1} parent=0
    #allocation2 [shape = 'u8[1024]{0}', space=vmem, size = 0x400, scoped, tag = 'input window, operand 0, single buffered']
    #allocation3 [shape = 's32[1]{0}', space=sflag, size = 0x4, scoped, tag = 'scoped memory for tpu_custom_call.1']
    #allocation4 [shape = 's32[1]{0}', space=sflag, size = 0x4, scoped, tag = 'scoped memory for tpu_custom_call.1']
    #allocation5 [shape = 'u8[1024]{0}', space=vmem, size = 0x400, scoped, tag = 'input window, operand 1, single buffered']
    #allocation6 [shape = 's32[1]{0}', space=sflag, size = 0x4, scoped, tag = 'scoped memory for tpu_custom_call.1']
    #allocation7 [shape = 'u8[512]{0}', space=vmem, size = 0x400, scoped, tag = 'input window, operand 3, single buffered']
    #allocation8 [shape = 'u8[512]{0}', space=vmem, size = 0x400, scoped, tag = 'input window, operand 5, single buffered']
    #allocation9 [shape = 's32[1]{0}', space=sflag, size = 0x4, scoped, tag = 'scoped memory for tpu_custom_call.1']
    #allocation10 [shape = 'u8[512]{0}', space=vmem, size = 0x400, scoped, tag = 'input window, operand 7, single buffered']
    #allocation11 [shape = 'u8[512]{0}', space=vmem, size = 0x400, scoped, tag = 'input window, operand 9, single buffered']
    #allocation12 [shape = 's32[1]{0}', space=sflag, size = 0x4, scoped, tag = 'scoped memory for tpu_custom_call.1']
    #allocation13 [shape = 'u8[512]{0}', space=vmem, size = 0x400, scoped, tag = 'input window, operand 11, single buffered']
    #allocation14 [shape = 'u8[512]{0}', space=vmem, size = 0x400, scoped, tag = 'input window, operand 13, single buffered']
    #allocation15 [shape = 's32[1]{0}', space=sflag, size = 0x4, scoped, tag = 'scoped memory for tpu_custom_call.1']
    #allocation16 [shape = 'u8[512]{0}', space=vmem, size = 0x400, scoped, tag = 'input window, operand 16, single buffered']
    #allocation17 [shape = 'u8[1024]{0}', space=vmem, size = 0x400, scoped, tag = 'output window, operand 0, single buffered']
    #allocation18 [shape = 'u8[1024]{0}', space=vmem, size = 0x400, scoped, tag = 'output window, operand 1, single buffered']
    #allocation19 [shape = 's32[1]{0}', space=sflag, size = 0x4, scoped, tag = 'scoped memory for tpu_custom_call.1']
    %97 = vsyncpa [#allocation3], 0
    %98 = vsyncpa [#allocation6], 0
    %99 = vsyncpa [#allocation9], 0
    %100 = vsyncpa [#allocation12], 0
    %101 = vsyncpa [#allocation15], 0
    %102 = vsyncpa [#allocation4], 0
    %103 = vsyncpa [#allocation19], 0
    // Predicated region
    $region2: #{tpu_custom_call.1} parent=1 // pred_check
      _
    $region3: #{tpu_custom_call.1} parent=1 // pred_check_branch
      %105 = sbr.rel (0) target = $region5
    $region4: #{tpu_custom_call.1} parent=1 // pred_region
      %s107 = ssub.s32 32, 32
      %108 = vsyncadd [#allocation3], %s107
      %s110 = sshll.u32 [#allocation2], 4
      %s111 = int_to_ptr.vmem [resolvable:$true] %s110
      %113 = dma.hbm_to_vmem [thread:$0]  %s1, 32, %s111, [#allocation3]
    $region5: #{tpu_custom_call.1} parent=1 // pred_fallthru
      _
    // Predicated region
    $region6: #{tpu_custom_call.1} parent=1 // pred_check
      _
    $region7: #{tpu_custom_call.1} parent=1 // pred_check_branch
      %115 = sbr.rel (0) target = $region9
    $region8: #{tpu_custom_call.1} parent=1 // pred_region
      %s117 = ssub.s32 32, 32
      %118 = vsyncadd [#allocation6], %s117
      %s120 = sshll.u32 [#allocation5], 4
      %s121 = int_to_ptr.vmem [resolvable:$true] %s120
      %123 = dma.hbm_to_vmem [thread:$0]  %s3, 32, %s121, [#allocation6]
    $region9: #{tpu_custom_call.1} parent=1 // pred_fallthru
      _
    // Predicated region
    $region10: #{tpu_custom_call.1} parent=1 // pred_check
      _
    $region11: #{tpu_custom_call.1} parent=1 // pred_check_branch
      %125 = sbr.rel (0) target = $region13
    $region12: #{tpu_custom_call.1} parent=1 // pred_region
      _
    $region13: #{tpu_custom_call.1} parent=1 // pred_fallthru
      _
    // Predicated region
    $region14: #{tpu_custom_call.1} parent=1 // pred_check
      _
    $region15: #{tpu_custom_call.1} parent=1 // pred_check_branch
      %127 = sbr.rel (0) target = $region17
    $region16: #{tpu_custom_call.1} parent=1 // pred_region
      %s129 = ssub.s32 16, 16
      %130 = vsyncadd [#allocation6], %s129
      %s132 = sshll.u32 [#allocation7], 4
      %s133 = int_to_ptr.vmem [resolvable:$true] %s132
      %135 = dma.hbm_to_vmem [thread:$0]  %s7, 16, %s133, [#allocation6]
    $region17: #{tpu_custom_call.1} parent=1 // pred_fallthru
      _
    // Predicated region
    $region18: #{tpu_custom_call.1} parent=1 // pred_check
      _
    $region19: #{tpu_custom_call.1} parent=1 // pred_check_branch
      %137 = sbr.rel (0) target = $region21
    $region20: #{tpu_custom_call.1} parent=1 // pred_region
      _
    $region21: #{tpu_custom_call.1} parent=1 // pred_fallthru
      _
    // Predicated region
    $region22: #{tpu_custom_call.1} parent=1 // pred_check
      _
    $region23: #{tpu_custom_call.1} parent=1 // pred_check_branch
      %139 = sbr.rel (0) target = $region25
    $region24: #{tpu_custom_call.1} parent=1 // pred_region
      %s141 = ssub.s32 16, 16
      %142 = vsyncadd [#allocation9], %s141
      %s144 = sshll.u32 [#allocation8], 4
      %s145 = int_to_ptr.vmem [resolvable:$true] %s144
      %147 = dma.hbm_to_vmem [thread:$0]  %s11, 16, %s145, [#allocation9]
    $region25: #{tpu_custom_call.1} parent=1 // pred_fallthru
      _
    // Predicated region
    $region26: #{tpu_custom_call.1} parent=1 // pred_check
      _
    $region27: #{tpu_custom_call.1} parent=1 // pred_check_branch
      %149 = sbr.rel (0) target = $region29
    $region28: #{tpu_custom_call.1} parent=1 // pred_region
      _
    $region29: #{tpu_custom_call.1} parent=1 // pred_fallthru
      _
    // Predicated region
    $region30: #{tpu_custom_call.1} parent=1 // pred_check
      _
    $region31: #{tpu_custom_call.1} parent=1 // pred_check_branch
      %151 = sbr.rel (0) target = $region33
    $region32: #{tpu_custom_call.1} parent=1 // pred_region
      %s153 = ssub.s32 16, 16
      %154 = vsyncadd [#allocation9], %s153
      %s156 = sshll.u32 [#allocation10], 4
      %s157 = int_to_ptr.vmem [resolvable:$true] %s156
      %159 = dma.hbm_to_vmem [thread:$0]  %s15, 16, %s157, [#allocation9]
    $region33: #{tpu_custom_call.1} parent=1 // pred_fallthru
      _
    // Predicated region
    $region34: #{tpu_custom_call.1} parent=1 // pred_check
      _
    $region35: #{tpu_custom_call.1} parent=1 // pred_check_branch
      %161 = sbr.rel (0) target = $region37
    $region36: #{tpu_custom_call.1} parent=1 // pred_region
      _
    $region37: #{tpu_custom_call.1} parent=1 // pred_fallthru
      _
    // Predicated region
    $region38: #{tpu_custom_call.1} parent=1 // pred_check
      _
    $region39: #{tpu_custom_call.1} parent=1 // pred_check_branch
      %163 = sbr.rel (0) target = $region41
    $region40: #{tpu_custom_call.1} parent=1 // pred_region
      %s165 = ssub.s32 16, 16
      %166 = vsyncadd [#allocation12], %s165
      %s168 = sshll.u32 [#allocation11], 4
      %s169 = int_to_ptr.vmem [resolvable:$true] %s168
      %171 = dma.hbm_to_vmem [thread:$0]  %s19, 16, %s169, [#allocation12]
    $region41: #{tpu_custom_call.1} parent=1 // pred_fallthru
      _
    // Predicated region
    $region42: #{tpu_custom_call.1} parent=1 // pred_check
      _
    $region43: #{tpu_custom_call.1} parent=1 // pred_check_branch
      %173 = sbr.rel (0) target = $region45
    $region44: #{tpu_custom_call.1} parent=1 // pred_region
      _
    $region45: #{tpu_custom_call.1} parent=1 // pred_fallthru
      _
    // Predicated region
    $region46: #{tpu_custom_call.1} parent=1 // pred_check
      _
    $region47: #{tpu_custom_call.1} parent=1 // pred_check_branch
      %175 = sbr.rel (0) target = $region49
    $region48: #{tpu_custom_call.1} parent=1 // pred_region
      %s177 = ssub.s32 16, 16
      %178 = vsyncadd [#allocation12], %s177
      %s180 = sshll.u32 [#allocation13], 4
      %s181 = int_to_ptr.vmem [resolvable:$true] %s180
      %183 = dma.hbm_to_vmem [thread:$0]  %s23, 16, %s181, [#allocation12]
    $region49: #{tpu_custom_call.1} parent=1 // pred_fallthru
      _
    // Predicated region
    $region50: #{tpu_custom_call.1} parent=1 // pred_check
      _
    $region51: #{tpu_custom_call.1} parent=1 // pred_check_branch
      %185 = sbr.rel (0) target = $region53
    $region52: #{tpu_custom_call.1} parent=1 // pred_region
      _
    $region53: #{tpu_custom_call.1} parent=1 // pred_fallthru
      _
    // Predicated region
    $region54: #{tpu_custom_call.1} parent=1 // pred_check
      _
    $region55: #{tpu_custom_call.1} parent=1 // pred_check_branch
      %187 = sbr.rel (0) target = $region57
    $region56: #{tpu_custom_call.1} parent=1 // pred_region
      %s189 = ssub.s32 16, 16
      %190 = vsyncadd [#allocation15], %s189
      %s192 = sshll.u32 [#allocation14], 4
      %s193 = int_to_ptr.vmem [resolvable:$true] %s192
      %195 = dma.hbm_to_vmem [thread:$0]  %s27, 16, %s193, [#allocation15]
    $region57: #{tpu_custom_call.1} parent=1 // pred_fallthru
      _
    // Predicated region
    $region58: #{tpu_custom_call.1} parent=1 // pred_check
      _
    $region59: #{tpu_custom_call.1} parent=1 // pred_check_branch
      %197 = sbr.rel (0) target = $region61
    $region60: #{tpu_custom_call.1} parent=1 // pred_region
      _
    $region61: #{tpu_custom_call.1} parent=1 // pred_fallthru
      _
    // Predicated region
    $region62: #{tpu_custom_call.1} parent=1 // pred_check
      _
    $region63: #{tpu_custom_call.1} parent=1 // pred_check_branch
      %199 = sbr.rel (0) target = $region65
    $region64: #{tpu_custom_call.1} parent=1 // pred_region
      _
    $region65: #{tpu_custom_call.1} parent=1 // pred_fallthru
      _
    // Predicated region
    $region66: #{tpu_custom_call.1} parent=1 // pred_check
      _
    $region67: #{tpu_custom_call.1} parent=1 // pred_check_branch
      %201 = sbr.rel (0) target = $region69
    $region68: #{tpu_custom_call.1} parent=1 // pred_region
      %s203 = ssub.s32 16, 16
      %204 = vsyncadd [#allocation15], %s203
      %s206 = sshll.u32 [#allocation16], 4
      %s207 = int_to_ptr.vmem [resolvable:$true] %s206
      %209 = dma.hbm_to_vmem [thread:$0]  %s33, 16, %s207, [#allocation15]
    $region69: #{tpu_custom_call.1} parent=1 // pred_fallthru
      _
    // Predicated region
    $region70: #{tpu_custom_call.1} parent=1 // pred_check
      _
    $region71: #{tpu_custom_call.1} parent=1 // pred_check_branch
      %211 = sbr.rel (0) target = $region73
    $region72: #{tpu_custom_call.1} parent=1 // pred_region
      _
    $region73: #{tpu_custom_call.1} parent=1 // pred_fallthru
      _
    // Predicated region
    $region74: #{tpu_custom_call.1} parent=1 // pred_check
      _
    $region75: #{tpu_custom_call.1} parent=1 // pred_check_branch
      %213 = sbr.rel (0) target = $region77
    $region76: #{tpu_custom_call.1} parent=1 // pred_region
      _
    $region77: #{tpu_custom_call.1} parent=1 // pred_fallthru
      _
    // Predicated region
    $region78: #{tpu_custom_call.1} parent=1 // pred_check
      _
    $region79: #{tpu_custom_call.1} parent=1 // pred_check_branch
      %215 = sbr.rel (0) target = $region81
    $region80: #{tpu_custom_call.1} parent=1 // pred_region
      _
    $region81: #{tpu_custom_call.1} parent=1 // pred_fallthru
      _
    // Predicated region
    $region82: #{tpu_custom_call.1} parent=1 // pred_check
      _
    $region83: #{tpu_custom_call.1} parent=1 // pred_check_branch
      %217 = sbr.rel (0) target = $region85
    $region84: #{tpu_custom_call.1} parent=1 // pred_region
      _
    $region85: #{tpu_custom_call.1} parent=1 // pred_fallthru
      _
    // Predicated region
    $region86: #{tpu_custom_call.1} parent=1 // pred_check
      _
    $region87: #{tpu_custom_call.1} parent=1 // pred_check_branch
      %219 = sbr.rel (0) target = $region89
    $region88: #{tpu_custom_call.1} parent=1 // pred_region
      _
    $region89: #{tpu_custom_call.1} parent=1 // pred_fallthru
      _
    // Predicated region
    $region90: #{tpu_custom_call.1} parent=1 // pred_check
      _
    $region91: #{tpu_custom_call.1} parent=1 // pred_check_branch
      %221 = sbr.rel (0) target = $region93
    $region92: #{tpu_custom_call.1} parent=1 // pred_region
      _
    $region93: #{tpu_custom_call.1} parent=1 // pred_fallthru
      _
    // Predicated region
    $region94: #{tpu_custom_call.1} parent=1 // pred_check
      _
    $region95: #{tpu_custom_call.1} parent=1 // pred_check_branch
      %223 = sbr.rel (0) target = $region97
    $region96: #{tpu_custom_call.1} parent=1 // pred_region
      _
    $region97: #{tpu_custom_call.1} parent=1 // pred_fallthru
      _
    // Predicated region
    $region98: #{tpu_custom_call.1} parent=1 // pred_check
      _
    $region99: #{tpu_custom_call.1} parent=1 // pred_check_branch
      %225 = sbr.rel (0) target = $region101
    $region100: #{tpu_custom_call.1} parent=1 // pred_region
      _
    $region101: #{tpu_custom_call.1} parent=1 // pred_fallthru
      _
    // Predicated region
    $region102: #{tpu_custom_call.1} parent=1 // pred_check
      _
    $region103: #{tpu_custom_call.1} parent=1 // pred_check_branch
      %227 = sbr.rel (0) target = $region105
    $region104: #{tpu_custom_call.1} parent=1 // pred_region
      _
    $region105: #{tpu_custom_call.1} parent=1 // pred_fallthru
      _
    // Predicated region
    $region106: #{tpu_custom_call.1} parent=1 // pred_check
      _
    $region107: #{tpu_custom_call.1} parent=1 // pred_check_branch
      %229 = sbr.rel (0) target = $region109
    $region108: #{tpu_custom_call.1} parent=1 // pred_region
      _
    $region109: #{tpu_custom_call.1} parent=1 // pred_fallthru
      _
    // Predicated region
    $region110: #{tpu_custom_call.1} parent=1 // pred_check
      _
    $region111: #{tpu_custom_call.1} parent=1 // pred_check_branch
      %231 = sbr.rel (0) target = $region113
    $region112: #{tpu_custom_call.1} parent=1 // pred_region
      _
    $region113: #{tpu_custom_call.1} parent=1 // pred_fallthru
      _
    // Predicated region
    $region114: #{tpu_custom_call.1} parent=1 // pred_check
      _
    $region115: #{tpu_custom_call.1} parent=1 // pred_check_branch
      %233 = sbr.rel (0) target = $region117
    $region116: #{tpu_custom_call.1} parent=1 // pred_region
      _
    $region117: #{tpu_custom_call.1} parent=1 // pred_fallthru
      _
    // Predicated region
    $region118: #{tpu_custom_call.1} parent=1 // pred_check
      _
    $region119: #{tpu_custom_call.1} parent=1 // pred_check_branch
      %235 = sbr.rel (0) target = $region121
    $region120: #{tpu_custom_call.1} parent=1 // pred_region
      _
    $region121: #{tpu_custom_call.1} parent=1 // pred_fallthru
      _
    // Predicated region
    $region122: #{tpu_custom_call.1} parent=1 // pred_check
      _
    $region123: #{tpu_custom_call.1} parent=1 // pred_check_branch
      %237 = sbr.rel (0) target = $region125
    $region124: #{tpu_custom_call.1} parent=1 // pred_region
      _
    $region125: #{tpu_custom_call.1} parent=1 // pred_fallthru
      _
    // Predicated region
    $region126: #{tpu_custom_call.1} parent=1 // pred_check
      _
    $region127: #{tpu_custom_call.1} parent=1 // pred_check_branch
      %239 = sbr.rel (0) target = $region129
    $region128: #{tpu_custom_call.1} parent=1 // pred_region
      _
    $region129: #{tpu_custom_call.1} parent=1 // pred_fallthru
      _
    // Predicated region
    $region130: #{tpu_custom_call.1} parent=1 // pred_check
      _
    $region131: #{tpu_custom_call.1} parent=1 // pred_check_branch
      %241 = sbr.rel (0) target = $region133
    $region132: #{tpu_custom_call.1} parent=1 // pred_region
      _
    $region133: #{tpu_custom_call.1} parent=1 // pred_fallthru
      _
    // Predicated region
    $region134: #{tpu_custom_call.1} parent=1 // pred_check
      _
    $region135: #{tpu_custom_call.1} parent=1 // pred_check_branch
      %243 = sbr.rel (0) target = $region137
    $region136: #{tpu_custom_call.1} parent=1 // pred_region
      _
    $region137: #{tpu_custom_call.1} parent=1 // pred_fallthru
      _
    // Predicated region
    $region138: #{tpu_custom_call.1} parent=1 // pred_check
      _
    $region139: #{tpu_custom_call.1} parent=1 // pred_check_branch
      %245 = sbr.rel (0) target = $region141
    $region140: #{tpu_custom_call.1} parent=1 // pred_region
      _
    $region141: #{tpu_custom_call.1} parent=1 // pred_fallthru
      _
    // Predicated region
    $region142: #{tpu_custom_call.1} parent=1 // pred_check
      _
    $region143: #{tpu_custom_call.1} parent=1 // pred_check_branch
      %247 = sbr.rel (0) target = $region145
    $region144: #{tpu_custom_call.1} parent=1 // pred_region
      _
    $region145: #{tpu_custom_call.1} parent=1 // pred_fallthru
      _
    // Predicated region
    $region146: #{tpu_custom_call.1} parent=1 // pred_check
      _
    $region147: #{tpu_custom_call.1} parent=1 // pred_check_branch
      %249 = sbr.rel (0) target = $region149
    $region148: #{tpu_custom_call.1} parent=1 // pred_region
      _
    $region149: #{tpu_custom_call.1} parent=1 // pred_fallthru
      _
    // Predicated region
    $region150: #{tpu_custom_call.1} parent=1 // pred_check
      _
    $region151: #{tpu_custom_call.1} parent=1 // pred_check_branch
      %251 = sbr.rel (0) target = $region153
    $region152: #{tpu_custom_call.1} parent=1 // pred_region
      _
    $region153: #{tpu_custom_call.1} parent=1 // pred_fallthru
      _
    // Predicated region
    $region154: #{tpu_custom_call.1} parent=1 // pred_check
      _
    $region155: #{tpu_custom_call.1} parent=1 // pred_check_branch
      %253 = sbr.rel (0) target = $region157
    $region156: #{tpu_custom_call.1} parent=1 // pred_region
      _
    $region157: #{tpu_custom_call.1} parent=1 // pred_fallthru
      _
    // Predicated region
    $region158: #{tpu_custom_call.1} parent=1 // pred_check
      _
    $region159: #{tpu_custom_call.1} parent=1 // pred_check_branch
      %255 = sbr.rel (0) target = $region161
    $region160: #{tpu_custom_call.1} parent=1 // pred_region
      _
    $region161: #{tpu_custom_call.1} parent=1 // pred_fallthru
      _
    // Predicated region
    $region162: #{tpu_custom_call.1} parent=1 // pred_check
      _
    $region163: #{tpu_custom_call.1} parent=1 // pred_check_branch
      %257 = sbr.rel (0) target = $region165
    $region164: #{tpu_custom_call.1} parent=1 // pred_region
      _
    $region165: #{tpu_custom_call.1} parent=1 // pred_fallthru
      _
    // Predicated region
    $region166: #{tpu_custom_call.1} parent=1 // pred_check
      _
    $region167: #{tpu_custom_call.1} parent=1 // pred_check_branch
      %259 = sbr.rel (0) target = $region169
    $region168: #{tpu_custom_call.1} parent=1 // pred_region
      _
    $region169: #{tpu_custom_call.1} parent=1 // pred_fallthru
      _
    // Predicated region
    $region170: #{tpu_custom_call.1} parent=1 // pred_check
      _
    $region171: #{tpu_custom_call.1} parent=1 // pred_check_branch
      %261 = sbr.rel (0) target = $region173
    $region172: #{tpu_custom_call.1} parent=1 // pred_region
      _
    $region173: #{tpu_custom_call.1} parent=1 // pred_fallthru
      _
    // Predicated region
    $region174: #{tpu_custom_call.1} parent=1 // pred_check
      _
    $region175: #{tpu_custom_call.1} parent=1 // pred_check_branch
      %263 = sbr.rel (0) target = $region177
    $region176: #{tpu_custom_call.1} parent=1 // pred_region
      _
    $region177: #{tpu_custom_call.1} parent=1 // pred_fallthru
      _
    // Predicated region
    $region178: #{tpu_custom_call.1} parent=1 // pred_check
      _
    $region179: #{tpu_custom_call.1} parent=1 // pred_check_branch
      %265 = sbr.rel (0) target = $region181
    $region180: #{tpu_custom_call.1} parent=1 // pred_region
      %266 = dma.done [#allocation3], 32
    $region181: #{tpu_custom_call.1} parent=1 // pred_fallthru
      _
    // Predicated region
    $region182: #{tpu_custom_call.1} parent=1 // pred_check
      _
    $region183: #{tpu_custom_call.1} parent=1 // pred_check_branch
      %268 = sbr.rel (0) target = $region185
    $region184: #{tpu_custom_call.1} parent=1 // pred_region
      %269 = dma.done [#allocation6], 32
    $region185: #{tpu_custom_call.1} parent=1 // pred_fallthru
      _
    // Predicated region
    $region186: #{tpu_custom_call.1} parent=1 // pred_check
      _
    $region187: #{tpu_custom_call.1} parent=1 // pred_check_branch
      %271 = sbr.rel (0) target = $region189
    $region188: #{tpu_custom_call.1} parent=1 // pred_region
      %272 = dma.done [#allocation6], 16
    $region189: #{tpu_custom_call.1} parent=1 // pred_fallthru
      _
    // Predicated region
    $region190: #{tpu_custom_call.1} parent=1 // pred_check
      _
    $region191: #{tpu_custom_call.1} parent=1 // pred_check_branch
      %274 = sbr.rel (0) target = $region193
    $region192: #{tpu_custom_call.1} parent=1 // pred_region
      %275 = dma.done [#allocation9], 16
    $region193: #{tpu_custom_call.1} parent=1 // pred_fallthru
      _
    // Predicated region
    $region194: #{tpu_custom_call.1} parent=1 // pred_check
      _
    $region195: #{tpu_custom_call.1} parent=1 // pred_check_branch
      %277 = sbr.rel (0) target = $region197
    $region196: #{tpu_custom_call.1} parent=1 // pred_region
      %278 = dma.done [#allocation9], 16
    $region197: #{tpu_custom_call.1} parent=1 // pred_fallthru
      _
    // Predicated region
    $region198: #{tpu_custom_call.1} parent=1 // pred_check
      _
    $region199: #{tpu_custom_call.1} parent=1 // pred_check_branch
      %280 = sbr.rel (0) target = $region201
    $region200: #{tpu_custom_call.1} parent=1 // pred_region
      %281 = dma.done [#allocation12], 16
    $region201: #{tpu_custom_call.1} parent=1 // pred_fallthru
      _
    // Predicated region
    $region202: #{tpu_custom_call.1} parent=1 // pred_check
      _
    $region203: #{tpu_custom_call.1} parent=1 // pred_check_branch
      %283 = sbr.rel (0) target = $region205
    $region204: #{tpu_custom_call.1} parent=1 // pred_region
      %284 = dma.done [#allocation12], 16
    $region205: #{tpu_custom_call.1} parent=1 // pred_fallthru
      _
    // Predicated region
    $region206: #{tpu_custom_call.1} parent=1 // pred_check
      _
    $region207: #{tpu_custom_call.1} parent=1 // pred_check_branch
      %286 = sbr.rel (0) target = $region209
    $region208: #{tpu_custom_call.1} parent=1 // pred_region
      %287 = dma.done [#allocation15], 16
    $region209: #{tpu_custom_call.1} parent=1 // pred_fallthru
      _
    // Predicated region
    $region210: #{tpu_custom_call.1} parent=1 // pred_check
      _
    $region211: #{tpu_custom_call.1} parent=1 // pred_check_branch
      %289 = sbr.rel (0) target = $region213
    $region212: #{tpu_custom_call.1} parent=1 // pred_region
      %290 = dma.done [#allocation15], 16
    $region213: #{tpu_custom_call.1} parent=1 // pred_fallthru
      _
    %v291 = vld [vmem:[#allocation2] sm:$0x3]
    %v292 = vld [vmem:[#allocation5] sm:$0x3]
    %v293 = vmul.f32 %v291, %v292
    %v294 = vld [vmem:[%s5] sm:$0xff]
    %v295 = vld [vmem:[%s5 + $0x8] sm:$0xff]
    %v296 = vld [vmem:[#allocation7] sm:$0x1]
    %v298 = vlaneseq
    %v299 = vshrl.u32 %v298, 7
    %v300 = vsub.s32 0, %v299
    %v301 = vrot.slane %v296, %v300
    %vm303 = vcmask 130048
    %v305 = vsel %vm303, %v293, 0
    %307 = vmatprep.subr.mxu0 0.0
    %308 = vmatpush1.msra.mxu0 %v294
    %309 = vmatprep.subr.mxu0 0.0
    %310 = vmatpush1.msra.mxu0 %v295
    %311 = vmatprep.subr.mxu0 0.0
    %312 = vmatpush1.msra.mxu0 0.0
    %313 = vmatprep.subr.mxu0 0.0
    %314 = vmatpush1.msra.mxu0 0.0
    %315 = vmatprep.subr.mxu0 0.0
    %316 = vmatpush1.msra.mxu0 0.0
    %317 = vmatprep.subr.mxu0 0.0
    %318 = vmatpush1.msra.mxu0 0.0
    %319 = vmatprep.subr.mxu0 0.0
    %320 = vmatpush1.msra.mxu0 0.0
    %321 = vmatprep.subr.mxu0 0.0
    %322 = vmatpush1.msra.mxu0 0.0
    %323 = vmatprep.subr.mxu0 0.0
    %324 = vmatpush1.msra.mxu0 0.0
    %325 = vmatprep.subr.mxu0 0.0
    %326 = vmatpush1.msra.mxu0 0.0
    %327 = vmatprep.subr.mxu0 0.0
    %328 = vmatpush1.msra.mxu0 0.0
    %329 = vmatprep.subr.mxu0 0.0
    %330 = vmatpush1.msra.mxu0 0.0
    %331 = vmatprep.subr.mxu0 0.0
    %332 = vmatpush1.msra.mxu0 0.0
    %333 = vmatprep.subr.mxu0 0.0
    %334 = vmatpush1.msra.mxu0 0.0
    %335 = vmatprep.subr.mxu0 0.0
    %336 = vmatpush1.msra.mxu0 0.0
    %337 = vmatprep.subr.mxu0 0.0
    %338 = vmatpush1.msra.mxu0 0.0
    %339 = vmatprep.subr.mxu0 0.0
    %340 = vmatpush1.msra.mxu0 0.0
    %341 = vmatprep.subr.mxu0 0.0
    %342 = vmatpush1.msra.mxu0 0.0
    %343 = vmatprep.subr.mxu0 0.0
    %344 = vmatpush1.msra.mxu0 0.0
    %345 = vmatprep.subr.mxu0 0.0
    %346 = vmatpush1.msra.mxu0 0.0
    %347 = vmatprep.subr.mxu0 0.0
    %348 = vmatpush1.msra.mxu0 0.0
    %349 = vmatprep.subr.mxu0 0.0
    %350 = vmatpush1.msra.mxu0 0.0
    %351 = vmatprep.subr.mxu0 0.0
    %352 = vmatpush1.msra.mxu0 0.0
    %353 = vmatprep.subr.mxu0 0.0
    %354 = vmatpush1.msra.mxu0 0.0
    %355 = vmatprep.subr.mxu0 0.0
    %356 = vmatpush1.msra.mxu0 0.0
    %357 = vmatprep.subr.mxu0 0.0
    %358 = vmatpush1.msra.mxu0 0.0
    %359 = vmatprep.subr.mxu0 0.0
    %360 = vmatpush1.msra.mxu0 0.0
    %361 = vmatprep.subr.mxu0 0.0
    %362 = vmatpush1.msra.mxu0 0.0
    %363 = vmatprep.subr.mxu0 0.0
    %364 = vmatpush1.msra.mxu0 0.0
    %365 = vmatprep.subr.mxu0 0.0
    %366 = vmatpush1.msra.mxu0 0.0
    %367 = vmatprep.subr.mxu0 0.0
    %368 = vmatpush1.msra.mxu0 0.0
    %369 = vmatprep.subr.mxu0 0.0
    %370 = vmatpush1.msra.mxu0 0.0
    %371 = vmatprep.mubr.f32.mxu0 0.0
    %372 = vmatmul.mubr.f32.gmra.mrb[0].mxu0 %v305
    %v373 = vpop.f32.mrb[0].mxu0
    %v374 = vadd.f32 %v301, %v373
    %v375 = vpop.f32.mrb[0].mxu0
    %376 = vdwg.mxu0
    %v377 = vmax.f32 %v374, 0.0
    %v378 = vld [vmem:[%s9] sm:$0xff]
    %v379 = vld [vmem:[%s9 + $0x8] sm:$0xff]
    %v380 = vld [vmem:[%s9 + $0x10] sm:$0xff]
    %v381 = vld [vmem:[%s9 + $0x18] sm:$0xff]
    %v382 = vld [vmem:[#allocation8] sm:$0x1]
    %v384 = vlaneseq
    %v385 = vshrl.u32 %v384, 7
    %v386 = vsub.s32 0, %v385
    %v387 = vrot.slane %v382, %v386
    %vm389 = vcmask 261120
    %v391 = vsel %vm389, %v377, 0
    %393 = vmatprep.subr.mxu0 0.0
    %394 = vmatpush1.msra.mxu0 %v378
    %395 = vmatprep.subr.mxu0 0.0
    %396 = vmatpush1.msra.mxu0 %v379
    %397 = vmatprep.subr.mxu0 0.0
    %398 = vmatpush1.msra.mxu0 %v380
    %399 = vmatprep.subr.mxu0 0.0
    %400 = vmatpush1.msra.mxu0 %v381
    %401 = vmatprep.subr.mxu0 0.0
    %402 = vmatpush1.msra.mxu0 0.0
    %403 = vmatprep.subr.mxu0 0.0
    %404 = vmatpush1.msra.mxu0 0.0
    %405 = vmatprep.subr.mxu0 0.0
    %406 = vmatpush1.msra.mxu0 0.0
    %407 = vmatprep.subr.mxu0 0.0
    %408 = vmatpush1.msra.mxu0 0.0
    %409 = vmatprep.subr.mxu0 0.0
    %410 = vmatpush1.msra.mxu0 0.0
    %411 = vmatprep.subr.mxu0 0.0
    %412 = vmatpush1.msra.mxu0 0.0
    %413 = vmatprep.subr.mxu0 0.0
    %414 = vmatpush1.msra.mxu0 0.0
    %415 = vmatprep.subr.mxu0 0.0
    %416 = vmatpush1.msra.mxu0 0.0
    %417 = vmatprep.subr.mxu0 0.0
    %418 = vmatpush1.msra.mxu0 0.0
    %419 = vmatprep.subr.mxu0 0.0
    %420 = vmatpush1.msra.mxu0 0.0
    %421 = vmatprep.subr.mxu0 0.0
    %422 = vmatpush1.msra.mxu0 0.0
    %423 = vmatprep.subr.mxu0 0.0
    %424 = vmatpush1.msra.mxu0 0.0
    %425 = vmatprep.subr.mxu0 0.0
    %426 = vmatpush1.msra.mxu0 0.0
    %427 = vmatprep.subr.mxu0 0.0
    %428 = vmatpush1.msra.mxu0 0.0
    %429 = vmatprep.subr.mxu0 0.0
    %430 = vmatpush1.msra.mxu0 0.0
    %431 = vmatprep.subr.mxu0 0.0
    %432 = vmatpush1.msra.mxu0 0.0
    %433 = vmatprep.subr.mxu0 0.0
    %434 = vmatpush1.msra.mxu0 0.0
    %435 = vmatprep.subr.mxu0 0.0
    %436 = vmatpush1.msra.mxu0 0.0
    %437 = vmatprep.subr.mxu0 0.0
    %438 = vmatpush1.msra.mxu0 0.0
    %439 = vmatprep.subr.mxu0 0.0
    %440 = vmatpush1.msra.mxu0 0.0
    %441 = vmatprep.subr.mxu0 0.0
    %442 = vmatpush1.msra.mxu0 0.0
    %443 = vmatprep.subr.mxu0 0.0
    %444 = vmatpush1.msra.mxu0 0.0
    %445 = vmatprep.subr.mxu0 0.0
    %446 = vmatpush1.msra.mxu0 0.0
    %447 = vmatprep.subr.mxu0 0.0
    %448 = vmatpush1.msra.mxu0 0.0
    %449 = vmatprep.subr.mxu0 0.0
    %450 = vmatpush1.msra.mxu0 0.0
    %451 = vmatprep.subr.mxu0 0.0
    %452 = vmatpush1.msra.mxu0 0.0
    %453 = vmatprep.subr.mxu0 0.0
    %454 = vmatpush1.msra.mxu0 0.0
    %455 = vmatprep.subr.mxu0 0.0
    %456 = vmatpush1.msra.mxu0 0.0
    %457 = vmatprep.mubr.f32.mxu0 0.0
    %458 = vmatmul.mubr.f32.gmra.mrb[0].mxu0 %v391
    %v459 = vpop.f32.mrb[0].mxu0
    %v460 = vadd.f32 %v387, %v459
    %v461 = vpop.f32.mrb[0].mxu0
    %462 = vdwg.mxu0
    %v463 = vmax.f32 %v460, 0.0
    %v464 = vld [vmem:[%s13] sm:$0xff]
    %v465 = vld [vmem:[%s13 + $0x8] sm:$0xff]
    %v466 = vld [vmem:[%s13 + $0x10] sm:$0xff]
    %v467 = vld [vmem:[%s13 + $0x18] sm:$0xff]
    %v468 = vld [vmem:[%s13 + $0x20] sm:$0xff]
    %v469 = vld [vmem:[%s13 + $0x28] sm:$0xff]
    %v470 = vld [vmem:[%s13 + $0x30] sm:$0xff]
    %v471 = vld [vmem:[%s13 + $0x38] sm:$0xff]
    %v472 = vld [vmem:[#allocation10] sm:$0x1]
    %v474 = vlaneseq
    %v475 = vshrl.u32 %v474, 7
    %v476 = vsub.s32 0, %v475
    %v477 = vrot.slane %v472, %v476
    %vm479 = vcmask 523264
    %v481 = vsel %vm479, %v463, 0
    %483 = vmatprep.subr.mxu0 0.0
    %484 = vmatpush1.msra.mxu0 %v464
    %485 = vmatprep.subr.mxu0 0.0
    %486 = vmatpush1.msra.mxu0 %v465
    %487 = vmatprep.subr.mxu0 0.0
    %488 = vmatpush1.msra.mxu0 %v466
    %489 = vmatprep.subr.mxu0 0.0
    %490 = vmatpush1.msra.mxu0 %v467
    %491 = vmatprep.subr.mxu0 0.0
    %492 = vmatpush1.msra.mxu0 %v468
    %493 = vmatprep.subr.mxu0 0.0
    %494 = vmatpush1.msra.mxu0 %v469
    %495 = vmatprep.subr.mxu0 0.0
    %496 = vmatpush1.msra.mxu0 %v470
    %497 = vmatprep.subr.mxu0 0.0
    %498 = vmatpush1.msra.mxu0 %v471
    %499 = vmatprep.subr.mxu0 0.0
    %500 = vmatpush1.msra.mxu0 0.0
    %501 = vmatprep.subr.mxu0 0.0
    %502 = vmatpush1.msra.mxu0 0.0
    %503 = vmatprep.subr.mxu0 0.0
    %504 = vmatpush1.msra.mxu0 0.0
    %505 = vmatprep.subr.mxu0 0.0
    %506 = vmatpush1.msra.mxu0 0.0
    %507 = vmatprep.subr.mxu0 0.0
    %508 = vmatpush1.msra.mxu0 0.0
    %509 = vmatprep.subr.mxu0 0.0
    %510 = vmatpush1.msra.mxu0 0.0
    %511 = vmatprep.subr.mxu0 0.0
    %512 = vmatpush1.msra.mxu0 0.0
    %513 = vmatprep.subr.mxu0 0.0
    %514 = vmatpush1.msra.mxu0 0.0
    %515 = vmatprep.subr.mxu0 0.0
    %516 = vmatpush1.msra.mxu0 0.0
    %517 = vmatprep.subr.mxu0 0.0
    %518 = vmatpush1.msra.mxu0 0.0
    %519 = vmatprep.subr.mxu0 0.0
    %520 = vmatpush1.msra.mxu0 0.0
    %521 = vmatprep.subr.mxu0 0.0
    %522 = vmatpush1.msra.mxu0 0.0
    %523 = vmatprep.subr.mxu0 0.0
    %524 = vmatpush1.msra.mxu0 0.0
    %525 = vmatprep.subr.mxu0 0.0
    %526 = vmatpush1.msra.mxu0 0.0
    %527 = vmatprep.subr.mxu0 0.0
    %528 = vmatpush1.msra.mxu0 0.0
    %529 = vmatprep.subr.mxu0 0.0
    %530 = vmatpush1.msra.mxu0 0.0
    %531 = vmatprep.subr.mxu0 0.0
    %532 = vmatpush1.msra.mxu0 0.0
    %533 = vmatprep.subr.mxu0 0.0
    %534 = vmatpush1.msra.mxu0 0.0
    %535 = vmatprep.subr.mxu0 0.0
    %536 = vmatpush1.msra.mxu0 0.0
    %537 = vmatprep.subr.mxu0 0.0
    %538 = vmatpush1.msra.mxu0 0.0
    %539 = vmatprep.subr.mxu0 0.0
    %540 = vmatpush1.msra.mxu0 0.0
    %541 = vmatprep.subr.mxu0 0.0
    %542 = vmatpush1.msra.mxu0 0.0
    %543 = vmatprep.subr.mxu0 0.0
    %544 = vmatpush1.msra.mxu0 0.0
    %545 = vmatprep.subr.mxu0 0.0
    %546 = vmatpush1.msra.mxu0 0.0
    %547 = vmatprep.mubr.f32.mxu0 0.0
    %548 = vmatmul.mubr.f32.gmra.mrb[0].mxu0 %v481
    %v549 = vpop.f32.mrb[0].mxu0
    %v550 = vadd.f32 %v477, %v549
    %v551 = vpop.f32.mrb[0].mxu0
    %552 = vdwg.mxu0
    %v553 = vmax.f32 %v550, 0.0
    %v554 = vld [vmem:[%s17] sm:$0xff]
    %v555 = vld [vmem:[%s17 + $0x8] sm:$0xff]
    %v556 = vld [vmem:[%s17 + $0x10] sm:$0xff]
    %v557 = vld [vmem:[%s17 + $0x18] sm:$0xff]
    %v558 = vld [vmem:[#allocation11] sm:$0x1]
    %v560 = vlaneseq
    %v561 = vshrl.u32 %v560, 7
    %v562 = vsub.s32 0, %v561
    %v563 = vrot.slane %v558, %v562
    %v566 = vsel %vm389, %v553, 0
    %568 = vmatprep.subr.mxu0 0.0
    %569 = vmatpush1.msra.mxu0 %v554
    %570 = vmatprep.subr.mxu0 0.0
    %571 = vmatpush1.msra.mxu0 %v555
    %572 = vmatprep.subr.mxu0 0.0
    %573 = vmatpush1.msra.mxu0 %v556
    %574 = vmatprep.subr.mxu0 0.0
    %575 = vmatpush1.msra.mxu0 %v557
    %576 = vmatprep.subr.mxu0 0.0
    %577 = vmatpush1.msra.mxu0 0.0
    %578 = vmatprep.subr.mxu0 0.0
    %579 = vmatpush1.msra.mxu0 0.0
    %580 = vmatprep.subr.mxu0 0.0
    %581 = vmatpush1.msra.mxu0 0.0
    %582 = vmatprep.subr.mxu0 0.0
    %583 = vmatpush1.msra.mxu0 0.0
    %584 = vmatprep.subr.mxu0 0.0
    %585 = vmatpush1.msra.mxu0 0.0
    %586 = vmatprep.subr.mxu0 0.0
    %587 = vmatpush1.msra.mxu0 0.0
    %588 = vmatprep.subr.mxu0 0.0
    %589 = vmatpush1.msra.mxu0 0.0
    %590 = vmatprep.subr.mxu0 0.0
    %591 = vmatpush1.msra.mxu0 0.0
    %592 = vmatprep.subr.mxu0 0.0
    %593 = vmatpush1.msra.mxu0 0.0
    %594 = vmatprep.subr.mxu0 0.0
    %595 = vmatpush1.msra.mxu0 0.0
    %596 = vmatprep.subr.mxu0 0.0
    %597 = vmatpush1.msra.mxu0 0.0
    %598 = vmatprep.subr.mxu0 0.0
    %599 = vmatpush1.msra.mxu0 0.0
    %600 = vmatprep.subr.mxu0 0.0
    %601 = vmatpush1.msra.mxu0 0.0
    %602 = vmatprep.subr.mxu0 0.0
    %603 = vmatpush1.msra.mxu0 0.0
    %604 = vmatprep.subr.mxu0 0.0
    %605 = vmatpush1.msra.mxu0 0.0
    %606 = vmatprep.subr.mxu0 0.0
    %607 = vmatpush1.msra.mxu0 0.0
    %608 = vmatprep.subr.mxu0 0.0
    %609 = vmatpush1.msra.mxu0 0.0
    %610 = vmatprep.subr.mxu0 0.0
    %611 = vmatpush1.msra.mxu0 0.0
    %612 = vmatprep.subr.mxu0 0.0
    %613 = vmatpush1.msra.mxu0 0.0
    %614 = vmatprep.subr.mxu0 0.0
    %615 = vmatpush1.msra.mxu0 0.0
    %616 = vmatprep.subr.mxu0 0.0
    %617 = vmatpush1.msra.mxu0 0.0
    %618 = vmatprep.subr.mxu0 0.0
    %619 = vmatpush1.msra.mxu0 0.0
    %620 = vmatprep.subr.mxu0 0.0
    %621 = vmatpush1.msra.mxu0 0.0
    %622 = vmatprep.subr.mxu0 0.0
    %623 = vmatpush1.msra.mxu0 0.0
    %624 = vmatprep.subr.mxu0 0.0
    %625 = vmatpush1.msra.mxu0 0.0
    %626 = vmatprep.subr.mxu0 0.0
    %627 = vmatpush1.msra.mxu0 0.0
    %628 = vmatprep.subr.mxu0 0.0
    %629 = vmatpush1.msra.mxu0 0.0
    %630 = vmatprep.subr.mxu0 0.0
    %631 = vmatpush1.msra.mxu0 0.0
    %632 = vmatprep.mubr.f32.mxu0 0.0
    %633 = vmatmul.mubr.f32.gmra.mrb[0].mxu0 %v566
    %v634 = vpop.f32.mrb[0].mxu0
    %v635 = vadd.f32 %v563, %v634
    %v636 = vpop.f32.mrb[0].mxu0
    %637 = vdwg.mxu0
    %v638 = vmax.f32 %v635, 0.0
    %v639 = vld [vmem:[%s21] sm:$0xff]
    %v640 = vld [vmem:[%s21 + $0x8] sm:$0xff]
    %v641 = vld [vmem:[%s21 + $0x10] sm:$0xff]
    %v642 = vld [vmem:[%s21 + $0x18] sm:$0xff]
    %v643 = vld [vmem:[%s21 + $0x20] sm:$0xff]
    %v644 = vld [vmem:[%s21 + $0x28] sm:$0xff]
    %v645 = vld [vmem:[%s21 + $0x30] sm:$0xff]
    %v646 = vld [vmem:[%s21 + $0x38] sm:$0xff]
    %v647 = vld [vmem:[#allocation13] sm:$0x1]
    %v649 = vlaneseq
    %v650 = vshrl.u32 %v649, 7
    %v651 = vsub.s32 0, %v650
    %v652 = vrot.slane %v647, %v651
    %v655 = vsel %vm479, %v638, 0
    %657 = vmatprep.subr.mxu0 0.0
    %658 = vmatpush1.msra.mxu0 %v639
    %659 = vmatprep.subr.mxu0 0.0
    %660 = vmatpush1.msra.mxu0 %v640
    %661 = vmatprep.subr.mxu0 0.0
    %662 = vmatpush1.msra.mxu0 %v641
    %663 = vmatprep.subr.mxu0 0.0
    %664 = vmatpush1.msra.mxu0 %v642
    %665 = vmatprep.subr.mxu0 0.0
    %666 = vmatpush1.msra.mxu0 %v643
    %667 = vmatprep.subr.mxu0 0.0
    %668 = vmatpush1.msra.mxu0 %v644
    %669 = vmatprep.subr.mxu0 0.0
    %670 = vmatpush1.msra.mxu0 %v645
    %671 = vmatprep.subr.mxu0 0.0
    %672 = vmatpush1.msra.mxu0 %v646
    %673 = vmatprep.subr.mxu0 0.0
    %674 = vmatpush1.msra.mxu0 0.0
    %675 = vmatprep.subr.mxu0 0.0
    %676 = vmatpush1.msra.mxu0 0.0
    %677 = vmatprep.subr.mxu0 0.0
    %678 = vmatpush1.msra.mxu0 0.0
    %679 = vmatprep.subr.mxu0 0.0
    %680 = vmatpush1.msra.mxu0 0.0
    %681 = vmatprep.subr.mxu0 0.0
    %682 = vmatpush1.msra.mxu0 0.0
    %683 = vmatprep.subr.mxu0 0.0
    %684 = vmatpush1.msra.mxu0 0.0
    %685 = vmatprep.subr.mxu0 0.0
    %686 = vmatpush1.msra.mxu0 0.0
    %687 = vmatprep.subr.mxu0 0.0
    %688 = vmatpush1.msra.mxu0 0.0
    %689 = vmatprep.subr.mxu0 0.0
    %690 = vmatpush1.msra.mxu0 0.0
    %691 = vmatprep.subr.mxu0 0.0
    %692 = vmatpush1.msra.mxu0 0.0
    %693 = vmatprep.subr.mxu0 0.0
    %694 = vmatpush1.msra.mxu0 0.0
    %695 = vmatprep.subr.mxu0 0.0
    %696 = vmatpush1.msra.mxu0 0.0
    %697 = vmatprep.subr.mxu0 0.0
    %698 = vmatpush1.msra.mxu0 0.0
    %699 = vmatprep.subr.mxu0 0.0
    %700 = vmatpush1.msra.mxu0 0.0
    %701 = vmatprep.subr.mxu0 0.0
    %702 = vmatpush1.msra.mxu0 0.0
    %703 = vmatprep.subr.mxu0 0.0
    %704 = vmatpush1.msra.mxu0 0.0
    %705 = vmatprep.subr.mxu0 0.0
    %706 = vmatpush1.msra.mxu0 0.0
    %707 = vmatprep.subr.mxu0 0.0
    %708 = vmatpush1.msra.mxu0 0.0
    %709 = vmatprep.subr.mxu0 0.0
    %710 = vmatpush1.msra.mxu0 0.0
    %711 = vmatprep.subr.mxu0 0.0
    %712 = vmatpush1.msra.mxu0 0.0
    %713 = vmatprep.subr.mxu0 0.0
    %714 = vmatpush1.msra.mxu0 0.0
    %715 = vmatprep.subr.mxu0 0.0
    %716 = vmatpush1.msra.mxu0 0.0
    %717 = vmatprep.subr.mxu0 0.0
    %718 = vmatpush1.msra.mxu0 0.0
    %719 = vmatprep.subr.mxu0 0.0
    %720 = vmatpush1.msra.mxu0 0.0
    %721 = vmatprep.mubr.f32.mxu0 0.0
    %722 = vmatmul.mubr.f32.gmra.mrb[0].mxu0 %v655
    %v723 = vpop.f32.mrb[0].mxu0
    %v724 = vadd.f32 %v652, %v723
    %v725 = vpop.f32.mrb[0].mxu0
    %726 = vdwg.mxu0
    %v727 = vmax.f32 %v724, 0.0
    %v728 = vld [vmem:[%s25] sm:$0xff]
    %v729 = vld [vmem:[%s25 + $0x8] sm:$0xff]
    %v730 = vld [vmem:[%s25 + $0x10] sm:$0xff]
    %v731 = vld [vmem:[%s25 + $0x18] sm:$0xff]
    %v732 = vld [vmem:[#allocation14] sm:$0x1]
    %v734 = vlaneseq
    %v735 = vshrl.u32 %v734, 7
    %v736 = vsub.s32 0, %v735
    %v737 = vrot.slane %v732, %v736
    %v740 = vsel %vm389, %v727, 0
    %742 = vmatprep.subr.mxu0 0.0
    %743 = vmatpush1.msra.mxu0 %v728
    %744 = vmatprep.subr.mxu0 0.0
    %745 = vmatpush1.msra.mxu0 %v729
    %746 = vmatprep.subr.mxu0 0.0
    %747 = vmatpush1.msra.mxu0 %v730
    %748 = vmatprep.subr.mxu0 0.0
    %749 = vmatpush1.msra.mxu0 %v731
    %750 = vmatprep.subr.mxu0 0.0
    %751 = vmatpush1.msra.mxu0 0.0
    %752 = vmatprep.subr.mxu0 0.0
    %753 = vmatpush1.msra.mxu0 0.0
    %754 = vmatprep.subr.mxu0 0.0
    %755 = vmatpush1.msra.mxu0 0.0
    %756 = vmatprep.subr.mxu0 0.0
    %757 = vmatpush1.msra.mxu0 0.0
    %758 = vmatprep.subr.mxu0 0.0
    %759 = vmatpush1.msra.mxu0 0.0
    %760 = vmatprep.subr.mxu0 0.0
    %761 = vmatpush1.msra.mxu0 0.0
    %762 = vmatprep.subr.mxu0 0.0
    %763 = vmatpush1.msra.mxu0 0.0
    %764 = vmatprep.subr.mxu0 0.0
    %765 = vmatpush1.msra.mxu0 0.0
    %766 = vmatprep.subr.mxu0 0.0
    %767 = vmatpush1.msra.mxu0 0.0
    %768 = vmatprep.subr.mxu0 0.0
    %769 = vmatpush1.msra.mxu0 0.0
    %770 = vmatprep.subr.mxu0 0.0
    %771 = vmatpush1.msra.mxu0 0.0
    %772 = vmatprep.subr.mxu0 0.0
    %773 = vmatpush1.msra.mxu0 0.0
    %774 = vmatprep.subr.mxu0 0.0
    %775 = vmatpush1.msra.mxu0 0.0
    %776 = vmatprep.subr.mxu0 0.0
    %777 = vmatpush1.msra.mxu0 0.0
    %778 = vmatprep.subr.mxu0 0.0
    %779 = vmatpush1.msra.mxu0 0.0
    %780 = vmatprep.subr.mxu0 0.0
    %781 = vmatpush1.msra.mxu0 0.0
    %782 = vmatprep.subr.mxu0 0.0
    %783 = vmatpush1.msra.mxu0 0.0
    %784 = vmatprep.subr.mxu0 0.0
    %785 = vmatpush1.msra.mxu0 0.0
    %786 = vmatprep.subr.mxu0 0.0
    %787 = vmatpush1.msra.mxu0 0.0
    %788 = vmatprep.subr.mxu0 0.0
    %789 = vmatpush1.msra.mxu0 0.0
    %790 = vmatprep.subr.mxu0 0.0
    %791 = vmatpush1.msra.mxu0 0.0
    %792 = vmatprep.subr.mxu0 0.0
    %793 = vmatpush1.msra.mxu0 0.0
    %794 = vmatprep.subr.mxu0 0.0
    %795 = vmatpush1.msra.mxu0 0.0
    %796 = vmatprep.subr.mxu0 0.0
    %797 = vmatpush1.msra.mxu0 0.0
    %798 = vmatprep.subr.mxu0 0.0
    %799 = vmatpush1.msra.mxu0 0.0
    %800 = vmatprep.subr.mxu0 0.0
    %801 = vmatpush1.msra.mxu0 0.0
    %802 = vmatprep.subr.mxu0 0.0
    %803 = vmatpush1.msra.mxu0 0.0
    %804 = vmatprep.subr.mxu0 0.0
    %805 = vmatpush1.msra.mxu0 0.0
    %806 = vmatprep.mubr.f32.mxu0 0.0
    %807 = vmatmul.mubr.f32.gmra.mrb[0].mxu0 %v740
    %v808 = vpop.f32.mrb[0].mxu0
    %v809 = vadd.f32 %v737, %v808
    %v810 = vpop.f32.mrb[0].mxu0
    %811 = vdwg.mxu0
    %v812 = vld [vmem:[%s29] sm:$0xff]
    %v813 = vld [vmem:[%s29 + $0x8] sm:$0xff]
    %v814 = vld [vmem:[%s29 + $0x10] sm:$0xff]
    %v815 = vld [vmem:[%s29 + $0x18] sm:$0xff]
    %v816 = vld [vmem:[%s29 + $0x20] sm:$0xff]
    %v817 = vld [vmem:[%s29 + $0x28] sm:$0xff]
    %v818 = vld [vmem:[%s29 + $0x30] sm:$0xff]
    %v819 = vld [vmem:[%s29 + $0x38] sm:$0xff]
    %v820 = vld [vmem:[%s31] sm:$0xff]
    %v821 = vld [vmem:[%s31 + $0x8] sm:$0xff]
    %v822 = vld [vmem:[%s31 + $0x10] sm:$0xff]
    %v823 = vld [vmem:[%s31 + $0x18] sm:$0xff]
    %v824 = vld [vmem:[%s31 + $0x20] sm:$0xff]
    %v825 = vld [vmem:[%s31 + $0x28] sm:$0xff]
    %v826 = vld [vmem:[%s31 + $0x30] sm:$0xff]
    %v827 = vld [vmem:[%s31 + $0x38] sm:$0xff]
    %v828 = vld [vmem:[#allocation16] sm:$0x1]
    %829 = vmatprep.subr.mxu0 0.0
    %830 = vmatpush1.msra.mxu0 %v820
    %831 = vmatprep.subr.mxu0 0.0
    %832 = vmatpush1.msra.mxu0 %v821
    %833 = vmatprep.subr.mxu0 0.0
    %834 = vmatpush1.msra.mxu0 %v822
    %835 = vmatprep.subr.mxu0 0.0
    %836 = vmatpush1.msra.mxu0 %v823
    %837 = vmatprep.subr.mxu0 0.0
    %838 = vmatpush1.msra.mxu0 %v824
    %839 = vmatprep.subr.mxu0 0.0
    %840 = vmatpush1.msra.mxu0 %v825
    %841 = vmatprep.subr.mxu0 0.0
    %842 = vmatpush1.msra.mxu0 %v826
    %843 = vmatprep.subr.mxu0 0.0
    %844 = vmatpush1.msra.mxu0 %v827
    %845 = vmatprep.subr.mxu0 0.0
    %846 = vmatpush1.msra.mxu0 0.0
    %847 = vmatprep.subr.mxu0 0.0
    %848 = vmatpush1.msra.mxu0 0.0
    %849 = vmatprep.subr.mxu0 0.0
    %850 = vmatpush1.msra.mxu0 0.0
    %851 = vmatprep.subr.mxu0 0.0
    %852 = vmatpush1.msra.mxu0 0.0
    %853 = vmatprep.subr.mxu0 0.0
    %854 = vmatpush1.msra.mxu0 0.0
    %855 = vmatprep.subr.mxu0 0.0
    %856 = vmatpush1.msra.mxu0 0.0
    %857 = vmatprep.subr.mxu0 0.0
    %858 = vmatpush1.msra.mxu0 0.0
    %859 = vmatprep.subr.mxu0 0.0
    %860 = vmatpush1.msra.mxu0 0.0
    %861 = vmatprep.subr.mxu0 0.0
    %862 = vmatpush1.msra.mxu0 0.0
    %863 = vmatprep.subr.mxu0 0.0
    %864 = vmatpush1.msra.mxu0 0.0
    %865 = vmatprep.subr.mxu0 0.0
    %866 = vmatpush1.msra.mxu0 0.0
    %867 = vmatprep.subr.mxu0 0.0
    %868 = vmatpush1.msra.mxu0 0.0
    %869 = vmatprep.subr.mxu0 0.0
    %870 = vmatpush1.msra.mxu0 0.0
    %871 = vmatprep.subr.mxu0 0.0
    %872 = vmatpush1.msra.mxu0 0.0
    %873 = vmatprep.subr.mxu0 0.0
    %874 = vmatpush1.msra.mxu0 0.0
    %875 = vmatprep.subr.mxu0 0.0
    %876 = vmatpush1.msra.mxu0 0.0
    %877 = vmatprep.subr.mxu0 0.0
    %878 = vmatpush1.msra.mxu0 0.0
    %879 = vmatprep.subr.mxu0 0.0
    %880 = vmatpush1.msra.mxu0 0.0
    %881 = vmatprep.subr.mxu0 0.0
    %882 = vmatpush1.msra.mxu0 0.0
    %883 = vmatprep.subr.mxu0 0.0
    %884 = vmatpush1.msra.mxu0 0.0
    %885 = vmatprep.subr.mxu0 0.0
    %886 = vmatpush1.msra.mxu0 0.0
    %887 = vmatprep.subr.mxu0 0.0
    %888 = vmatpush1.msra.mxu0 0.0
    %889 = vmatprep.subr.mxu0 0.0
    %890 = vmatpush1.msra.mxu0 0.0
    %891 = vmatprep.subr.mxu0 0.0
    %892 = vmatpush1.msra.mxu0 0.0
    %893 = vmatprep.mubr.f32.mxu0 0.0
    %894 = vmatmul.mubr.f32.gmra.mrb[0].mxu0 %v481
    %v895 = vpop.f32.mrb[0].mxu0
    %v896 = vadd.f32 0.0, %v895
    %v897 = vpop.f32.mrb[0].mxu0
    %898 = vdwg.mxu0
    %v900 = vsel %vm479, %v809, 0
    %902 = vmatprep.subr.mxu0 0.0
    %903 = vmatpush1.msra.mxu0 %v812
    %904 = vmatprep.subr.mxu0 0.0
    %905 = vmatpush1.msra.mxu0 %v813
    %906 = vmatprep.subr.mxu0 0.0
    %907 = vmatpush1.msra.mxu0 %v814
    %908 = vmatprep.subr.mxu0 0.0
    %909 = vmatpush1.msra.mxu0 %v815
    %910 = vmatprep.subr.mxu0 0.0
    %911 = vmatpush1.msra.mxu0 %v816
    %912 = vmatprep.subr.mxu0 0.0
    %913 = vmatpush1.msra.mxu0 %v817
    %914 = vmatprep.subr.mxu0 0.0
    %915 = vmatpush1.msra.mxu0 %v818
    %916 = vmatprep.subr.mxu0 0.0
    %917 = vmatpush1.msra.mxu0 %v819
    %918 = vmatprep.subr.mxu0 0.0
    %919 = vmatpush1.msra.mxu0 0.0
    %920 = vmatprep.subr.mxu0 0.0
    %921 = vmatpush1.msra.mxu0 0.0
    %922 = vmatprep.subr.mxu0 0.0
    %923 = vmatpush1.msra.mxu0 0.0
    %924 = vmatprep.subr.mxu0 0.0
    %925 = vmatpush1.msra.mxu0 0.0
    %926 = vmatprep.subr.mxu0 0.0
    %927 = vmatpush1.msra.mxu0 0.0
    %928 = vmatprep.subr.mxu0 0.0
    %929 = vmatpush1.msra.mxu0 0.0
    %930 = vmatprep.subr.mxu0 0.0
    %931 = vmatpush1.msra.mxu0 0.0
    %932 = vmatprep.subr.mxu0 0.0
    %933 = vmatpush1.msra.mxu0 0.0
    %934 = vmatprep.subr.mxu0 0.0
    %935 = vmatpush1.msra.mxu0 0.0
    %936 = vmatprep.subr.mxu0 0.0
    %937 = vmatpush1.msra.mxu0 0.0
    %938 = vmatprep.subr.mxu0 0.0
    %939 = vmatpush1.msra.mxu0 0.0
    %940 = vmatprep.subr.mxu0 0.0
    %941 = vmatpush1.msra.mxu0 0.0
    %942 = vmatprep.subr.mxu0 0.0
    %943 = vmatpush1.msra.mxu0 0.0
    %944 = vmatprep.subr.mxu0 0.0
    %945 = vmatpush1.msra.mxu0 0.0
    %946 = vmatprep.subr.mxu0 0.0
    %947 = vmatpush1.msra.mxu0 0.0
    %948 = vmatprep.subr.mxu0 0.0
    %949 = vmatpush1.msra.mxu0 0.0
    %950 = vmatprep.subr.mxu0 0.0
    %951 = vmatpush1.msra.mxu0 0.0
    %952 = vmatprep.subr.mxu0 0.0
    %953 = vmatpush1.msra.mxu0 0.0
    %954 = vmatprep.subr.mxu0 0.0
    %955 = vmatpush1.msra.mxu0 0.0
    %956 = vmatprep.subr.mxu0 0.0
    %957 = vmatpush1.msra.mxu0 0.0
    %958 = vmatprep.subr.mxu0 0.0
    %959 = vmatpush1.msra.mxu0 0.0
    %960 = vmatprep.subr.mxu0 0.0
    %961 = vmatpush1.msra.mxu0 0.0
    %962 = vmatprep.subr.mxu0 0.0
    %963 = vmatpush1.msra.mxu0 0.0
    %964 = vmatprep.subr.mxu0 0.0
    %965 = vmatpush1.msra.mxu0 0.0
    %966 = vmatprep.mubr.f32.mxu0 0.0
    %967 = vmatmul.mubr.f32.gmra.mrb[0].mxu0 %v900
    %v968 = vpop.f32.mrb[0].mxu0
    %v969 = vadd.f32 %v896, %v968
    %v970 = vpop.f32.mrb[0].mxu0
    %971 = vdwg.mxu0
    %v973 = vlaneseq
    %v974 = vshrl.u32 %v973, 7
    %v975 = vsub.s32 0, %v974
    %v976 = vrot.slane %v828, %v975
    %v978 = vadd.f32 %v969, %v976
    %v979 = vmax.f32 %v978, 0.0
    %v980 = vld [vmem:[%s35] sm:$0xff]
    %v981 = vld [vmem:[%s35 + $0x8] sm:$0xff]
    %v982 = vld [vmem:[%s35 + $0x10] sm:$0xff]
    %v983 = vld [vmem:[%s35 + $0x18] sm:$0xff]
    %v984 = vld [vmem:[%s35 + $0x20] sm:$0xff]
    %v985 = vld [vmem:[%s35 + $0x28] sm:$0xff]
    %v986 = vld [vmem:[%s35 + $0x30] sm:$0xff]
    %v987 = vld [vmem:[%s35 + $0x38] sm:$0xff]
    %v988 = vld [vmem:[%s37] sm:$0x1]
    %v990 = vlaneseq
    %v991 = vshrl.u32 %v990, 7
    %v992 = vsub.s32 0, %v991
    %v993 = vrot.slane %v988, %v992
    %v996 = vsel %vm479, %v979, 0
    %998 = vmatprep.subr.mxu0 0.0
    %999 = vmatpush1.msra.mxu0 %v980
    %1000 = vmatprep.subr.mxu0 0.0
    %1001 = vmatpush1.msra.mxu0 %v981
    %1002 = vmatprep.subr.mxu0 0.0
    %1003 = vmatpush1.msra.mxu0 %v982
    %1004 = vmatprep.subr.mxu0 0.0
    %1005 = vmatpush1.msra.mxu0 %v983
    %1006 = vmatprep.subr.mxu0 0.0
    %1007 = vmatpush1.msra.mxu0 %v984
    %1008 = vmatprep.subr.mxu0 0.0
    %1009 = vmatpush1.msra.mxu0 %v985
    %1010 = vmatprep.subr.mxu0 0.0
    %1011 = vmatpush1.msra.mxu0 %v986
    %1012 = vmatprep.subr.mxu0 0.0
    %1013 = vmatpush1.msra.mxu0 %v987
    %1014 = vmatprep.subr.mxu0 0.0
    %1015 = vmatpush1.msra.mxu0 0.0
    %1016 = vmatprep.subr.mxu0 0.0
    %1017 = vmatpush1.msra.mxu0 0.0
    %1018 = vmatprep.subr.mxu0 0.0
    %1019 = vmatpush1.msra.mxu0 0.0
    %1020 = vmatprep.subr.mxu0 0.0
    %1021 = vmatpush1.msra.mxu0 0.0
    %1022 = vmatprep.subr.mxu0 0.0
    %1023 = vmatpush1.msra.mxu0 0.0
    %1024 = vmatprep.subr.mxu0 0.0
    %1025 = vmatpush1.msra.mxu0 0.0
    %1026 = vmatprep.subr.mxu0 0.0
    %1027 = vmatpush1.msra.mxu0 0.0
    %1028 = vmatprep.subr.mxu0 0.0
    %1029 = vmatpush1.msra.mxu0 0.0
    %1030 = vmatprep.subr.mxu0 0.0
    %1031 = vmatpush1.msra.mxu0 0.0
    %1032 = vmatprep.subr.mxu0 0.0
    %1033 = vmatpush1.msra.mxu0 0.0
    %1034 = vmatprep.subr.mxu0 0.0
    %1035 = vmatpush1.msra.mxu0 0.0
    %1036 = vmatprep.subr.mxu0 0.0
    %1037 = vmatpush1.msra.mxu0 0.0
    %1038 = vmatprep.subr.mxu0 0.0
    %1039 = vmatpush1.msra.mxu0 0.0
    %1040 = vmatprep.subr.mxu0 0.0
    %1041 = vmatpush1.msra.mxu0 0.0
    %1042 = vmatprep.subr.mxu0 0.0
    %1043 = vmatpush1.msra.mxu0 0.0
    %1044 = vmatprep.subr.mxu0 0.0
    %1045 = vmatpush1.msra.mxu0 0.0
    %1046 = vmatprep.subr.mxu0 0.0
    %1047 = vmatpush1.msra.mxu0 0.0
    %1048 = vmatprep.subr.mxu0 0.0
    %1049 = vmatpush1.msra.mxu0 0.0
    %1050 = vmatprep.subr.mxu0 0.0
    %1051 = vmatpush1.msra.mxu0 0.0
    %1052 = vmatprep.subr.mxu0 0.0
    %1053 = vmatpush1.msra.mxu0 0.0
    %1054 = vmatprep.subr.mxu0 0.0
    %1055 = vmatpush1.msra.mxu0 0.0
    %1056 = vmatprep.subr.mxu0 0.0
    %1057 = vmatpush1.msra.mxu0 0.0
    %1058 = vmatprep.subr.mxu0 0.0
    %1059 = vmatpush1.msra.mxu0 0.0
    %1060 = vmatprep.subr.mxu0 0.0
    %1061 = vmatpush1.msra.mxu0 0.0
    %1062 = vmatprep.mubr.f32.mxu0 0.0
    %1063 = vmatmul.mubr.f32.gmra.mrb[0].mxu0 %v996
    %v1064 = vpop.f32.mrb[0].mxu0
    %v1065 = vadd.f32 %v993, %v1064
    %v1066 = vpop.f32.mrb[0].mxu0
    %1067 = vdwg.mxu0
    %v1068 = vmax.f32 %v1065, 0.0
    %v1069 = vld [vmem:[%s39] sm:$0xff]
    %v1070 = vld [vmem:[%s39 + $0x8] sm:$0xff]
    %v1071 = vld [vmem:[%s39 + $0x10] sm:$0xff]
    %v1072 = vld [vmem:[%s39 + $0x18] sm:$0xff]
    %v1073 = vld [vmem:[%s41] sm:$0x1]
    %v1075 = vlaneseq
    %v1076 = vshrl.u32 %v1075, 7
    %v1077 = vsub.s32 0, %v1076
    %v1078 = vrot.slane %v1073, %v1077
    %v1081 = vsel %vm389, %v1068, 0
    %1083 = vmatprep.subr.mxu0 0.0
    %1084 = vmatpush1.msra.mxu0 %v1069
    %1085 = vmatprep.subr.mxu0 0.0
    %1086 = vmatpush1.msra.mxu0 %v1070
    %1087 = vmatprep.subr.mxu0 0.0
    %1088 = vmatpush1.msra.mxu0 %v1071
    %1089 = vmatprep.subr.mxu0 0.0
    %1090 = vmatpush1.msra.mxu0 %v1072
    %1091 = vmatprep.subr.mxu0 0.0
    %1092 = vmatpush1.msra.mxu0 0.0
    %1093 = vmatprep.subr.mxu0 0.0
    %1094 = vmatpush1.msra.mxu0 0.0
    %1095 = vmatprep.subr.mxu0 0.0
    %1096 = vmatpush1.msra.mxu0 0.0
    %1097 = vmatprep.subr.mxu0 0.0
    %1098 = vmatpush1.msra.mxu0 0.0
    %1099 = vmatprep.subr.mxu0 0.0
    %1100 = vmatpush1.msra.mxu0 0.0
    %1101 = vmatprep.subr.mxu0 0.0
    %1102 = vmatpush1.msra.mxu0 0.0
    %1103 = vmatprep.subr.mxu0 0.0
    %1104 = vmatpush1.msra.mxu0 0.0
    %1105 = vmatprep.subr.mxu0 0.0
    %1106 = vmatpush1.msra.mxu0 0.0
    %1107 = vmatprep.subr.mxu0 0.0
    %1108 = vmatpush1.msra.mxu0 0.0
    %1109 = vmatprep.subr.mxu0 0.0
    %1110 = vmatpush1.msra.mxu0 0.0
    %1111 = vmatprep.subr.mxu0 0.0
    %1112 = vmatpush1.msra.mxu0 0.0
    %1113 = vmatprep.subr.mxu0 0.0
    %1114 = vmatpush1.msra.mxu0 0.0
    %1115 = vmatprep.subr.mxu0 0.0
    %1116 = vmatpush1.msra.mxu0 0.0
    %1117 = vmatprep.subr.mxu0 0.0
    %1118 = vmatpush1.msra.mxu0 0.0
    %1119 = vmatprep.subr.mxu0 0.0
    %1120 = vmatpush1.msra.mxu0 0.0
    %1121 = vmatprep.subr.mxu0 0.0
    %1122 = vmatpush1.msra.mxu0 0.0
    %1123 = vmatprep.subr.mxu0 0.0
    %1124 = vmatpush1.msra.mxu0 0.0
    %1125 = vmatprep.subr.mxu0 0.0
    %1126 = vmatpush1.msra.mxu0 0.0
    %1127 = vmatprep.subr.mxu0 0.0
    %1128 = vmatpush1.msra.mxu0 0.0
    %1129 = vmatprep.subr.mxu0 0.0
    %1130 = vmatpush1.msra.mxu0 0.0
    %1131 = vmatprep.subr.mxu0 0.0
    %1132 = vmatpush1.msra.mxu0 0.0
    %1133 = vmatprep.subr.mxu0 0.0
    %1134 = vmatpush1.msra.mxu0 0.0
    %1135 = vmatprep.subr.mxu0 0.0
    %1136 = vmatpush1.msra.mxu0 0.0
    %1137 = vmatprep.subr.mxu0 0.0
    %1138 = vmatpush1.msra.mxu0 0.0
    %1139 = vmatprep.subr.mxu0 0.0
    %1140 = vmatpush1.msra.mxu0 0.0
    %1141 = vmatprep.subr.mxu0 0.0
    %1142 = vmatpush1.msra.mxu0 0.0
    %1143 = vmatprep.subr.mxu0 0.0
    %1144 = vmatpush1.msra.mxu0 0.0
    %1145 = vmatprep.subr.mxu0 0.0
    %1146 = vmatpush1.msra.mxu0 0.0
    %1147 = vmatprep.mubr.f32.mxu0 0.0
    %1148 = vmatmul.mubr.f32.gmra.mrb[0].mxu0 %v1081
    %v1149 = vpop.f32.mrb[0].mxu0
    %v1150 = vadd.f32 %v1078, %v1149
    %v1151 = vpop.f32.mrb[0].mxu0
    %1152 = vdwg.mxu0
    %v1153 = vmax.f32 %v1150, 0.0
    %v1154 = vld [vmem:[%s43] sm:$0xff]
    %v1155 = vld [vmem:[%s43 + $0x8] sm:$0xff]
    %v1156 = vld [vmem:[%s43 + $0x10] sm:$0xff]
    %v1157 = vld [vmem:[%s43 + $0x18] sm:$0xff]
    %v1158 = vld [vmem:[%s45] sm:$0x1]
    %v1160 = vlaneseq
    %v1161 = vshrl.u32 %v1160, 7
    %v1162 = vsub.s32 0, %v1161
    %v1163 = vrot.slane %v1158, %v1162
    %v1166 = vsel %vm389, %v1153, 0
    %1168 = vmatprep.subr.mxu0 0.0
    %1169 = vmatpush1.msra.mxu0 %v1154
    %1170 = vmatprep.subr.mxu0 0.0
    %1171 = vmatpush1.msra.mxu0 %v1155
    %1172 = vmatprep.subr.mxu0 0.0
    %1173 = vmatpush1.msra.mxu0 %v1156
    %1174 = vmatprep.subr.mxu0 0.0
    %1175 = vmatpush1.msra.mxu0 %v1157
    %1176 = vmatprep.subr.mxu0 0.0
    %1177 = vmatpush1.msra.mxu0 0.0
    %1178 = vmatprep.subr.mxu0 0.0
    %1179 = vmatpush1.msra.mxu0 0.0
    %1180 = vmatprep.subr.mxu0 0.0
    %1181 = vmatpush1.msra.mxu0 0.0
    %1182 = vmatprep.subr.mxu0 0.0
    %1183 = vmatpush1.msra.mxu0 0.0
    %1184 = vmatprep.subr.mxu0 0.0
    %1185 = vmatpush1.msra.mxu0 0.0
    %1186 = vmatprep.subr.mxu0 0.0
    %1187 = vmatpush1.msra.mxu0 0.0
    %1188 = vmatprep.subr.mxu0 0.0
    %1189 = vmatpush1.msra.mxu0 0.0
    %1190 = vmatprep.subr.mxu0 0.0
    %1191 = vmatpush1.msra.mxu0 0.0
    %1192 = vmatprep.subr.mxu0 0.0
    %1193 = vmatpush1.msra.mxu0 0.0
    %1194 = vmatprep.subr.mxu0 0.0
    %1195 = vmatpush1.msra.mxu0 0.0
    %1196 = vmatprep.subr.mxu0 0.0
    %1197 = vmatpush1.msra.mxu0 0.0
    %1198 = vmatprep.subr.mxu0 0.0
    %1199 = vmatpush1.msra.mxu0 0.0
    %1200 = vmatprep.subr.mxu0 0.0
    %1201 = vmatpush1.msra.mxu0 0.0
    %1202 = vmatprep.subr.mxu0 0.0
    %1203 = vmatpush1.msra.mxu0 0.0
    %1204 = vmatprep.subr.mxu0 0.0
    %1205 = vmatpush1.msra.mxu0 0.0
    %1206 = vmatprep.subr.mxu0 0.0
    %1207 = vmatpush1.msra.mxu0 0.0
    %1208 = vmatprep.subr.mxu0 0.0
    %1209 = vmatpush1.msra.mxu0 0.0
    %1210 = vmatprep.subr.mxu0 0.0
    %1211 = vmatpush1.msra.mxu0 0.0
    %1212 = vmatprep.subr.mxu0 0.0
    %1213 = vmatpush1.msra.mxu0 0.0
    %1214 = vmatprep.subr.mxu0 0.0
    %1215 = vmatpush1.msra.mxu0 0.0
    %1216 = vmatprep.subr.mxu0 0.0
    %1217 = vmatpush1.msra.mxu0 0.0
    %1218 = vmatprep.subr.mxu0 0.0
    %1219 = vmatpush1.msra.mxu0 0.0
    %1220 = vmatprep.subr.mxu0 0.0
    %1221 = vmatpush1.msra.mxu0 0.0
    %1222 = vmatprep.subr.mxu0 0.0
    %1223 = vmatpush1.msra.mxu0 0.0
    %1224 = vmatprep.subr.mxu0 0.0
    %1225 = vmatpush1.msra.mxu0 0.0
    %1226 = vmatprep.subr.mxu0 0.0
    %1227 = vmatpush1.msra.mxu0 0.0
    %1228 = vmatprep.subr.mxu0 0.0
    %1229 = vmatpush1.msra.mxu0 0.0
    %1230 = vmatprep.subr.mxu0 0.0
    %1231 = vmatpush1.msra.mxu0 0.0
    %1232 = vmatprep.mubr.f32.mxu0 0.0
    %1233 = vmatmul.mubr.f32.gmra.mrb[0].mxu0 %v1166
    %v1234 = vpop.f32.mrb[0].mxu0
    %v1235 = vadd.f32 %v1163, %v1234
    %v1236 = vpop.f32.mrb[0].mxu0
    %1237 = vdwg.mxu0
    %v1238 = vld [vmem:[%s47] sm:$0xff]
    %v1239 = vld [vmem:[%s49] sm:$0x1]
    %v1241 = vlaneseq
    %v1242 = vshrl.u32 %v1241, 7
    %v1243 = vsub.s32 0, %v1242
    %v1244 = vrot.slane %v1239, %v1243
    %vm1246 = vcmask 64512
    %v1248 = vsel %vm1246, %v1235, 0
    %1250 = vmatprep.subr.mxu0 0.0
    %1251 = vmatpush1.msra.mxu0 %v1238
    %1252 = vmatprep.subr.mxu0 0.0
    %1253 = vmatpush1.msra.mxu0 0.0
    %1254 = vmatprep.subr.mxu0 0.0
    %1255 = vmatpush1.msra.mxu0 0.0
    %1256 = vmatprep.subr.mxu0 0.0
    %1257 = vmatpush1.msra.mxu0 0.0
    %1258 = vmatprep.subr.mxu0 0.0
    %1259 = vmatpush1.msra.mxu0 0.0
    %1260 = vmatprep.subr.mxu0 0.0
    %1261 = vmatpush1.msra.mxu0 0.0
    %1262 = vmatprep.subr.mxu0 0.0
    %1263 = vmatpush1.msra.mxu0 0.0
    %1264 = vmatprep.subr.mxu0 0.0
    %1265 = vmatpush1.msra.mxu0 0.0
    %1266 = vmatprep.subr.mxu0 0.0
    %1267 = vmatpush1.msra.mxu0 0.0
    %1268 = vmatprep.subr.mxu0 0.0
    %1269 = vmatpush1.msra.mxu0 0.0
    %1270 = vmatprep.subr.mxu0 0.0
    %1271 = vmatpush1.msra.mxu0 0.0
    %1272 = vmatprep.subr.mxu0 0.0
    %1273 = vmatpush1.msra.mxu0 0.0
    %1274 = vmatprep.subr.mxu0 0.0
    %1275 = vmatpush1.msra.mxu0 0.0
    %1276 = vmatprep.subr.mxu0 0.0
    %1277 = vmatpush1.msra.mxu0 0.0
    %1278 = vmatprep.subr.mxu0 0.0
    %1279 = vmatpush1.msra.mxu0 0.0
    %1280 = vmatprep.subr.mxu0 0.0
    %1281 = vmatpush1.msra.mxu0 0.0
    %1282 = vmatprep.subr.mxu0 0.0
    %1283 = vmatpush1.msra.mxu0 0.0
    %1284 = vmatprep.subr.mxu0 0.0
    %1285 = vmatpush1.msra.mxu0 0.0
    %1286 = vmatprep.subr.mxu0 0.0
    %1287 = vmatpush1.msra.mxu0 0.0
    %1288 = vmatprep.subr.mxu0 0.0
    %1289 = vmatpush1.msra.mxu0 0.0
    %1290 = vmatprep.subr.mxu0 0.0
    %1291 = vmatpush1.msra.mxu0 0.0
    %1292 = vmatprep.subr.mxu0 0.0
    %1293 = vmatpush1.msra.mxu0 0.0
    %1294 = vmatprep.subr.mxu0 0.0
    %1295 = vmatpush1.msra.mxu0 0.0
    %1296 = vmatprep.subr.mxu0 0.0
    %1297 = vmatpush1.msra.mxu0 0.0
    %1298 = vmatprep.subr.mxu0 0.0
    %1299 = vmatpush1.msra.mxu0 0.0
    %1300 = vmatprep.subr.mxu0 0.0
    %1301 = vmatpush1.msra.mxu0 0.0
    %1302 = vmatprep.subr.mxu0 0.0
    %1303 = vmatpush1.msra.mxu0 0.0
    %1304 = vmatprep.subr.mxu0 0.0
    %1305 = vmatpush1.msra.mxu0 0.0
    %1306 = vmatprep.subr.mxu0 0.0
    %1307 = vmatpush1.msra.mxu0 0.0
    %1308 = vmatprep.subr.mxu0 0.0
    %1309 = vmatpush1.msra.mxu0 0.0
    %1310 = vmatprep.subr.mxu0 0.0
    %1311 = vmatpush1.msra.mxu0 0.0
    %1312 = vmatprep.subr.mxu0 0.0
    %1313 = vmatpush1.msra.mxu0 0.0
    %1314 = vmatprep.mubr.f32.mxu0 0.0
    %1315 = vmatmul.mubr.f32.gmra.mrb[0].mxu0 %v1248
    %v1316 = vpop.f32.mrb[0].mxu0
    %v1317 = vadd.f32 %v1244, %v1316
    %v1318 = vpop.f32.mrb[0].mxu0
    %1319 = vdwg.mxu0
    %v1320 = vmax.f32 %v1317, 0.0
    %v1321 = vld [vmem:[%s51] sm:$0xff]
    %v1322 = vld [vmem:[%s51 + $0x8] sm:$0xff]
    %v1323 = vld [vmem:[%s51 + $0x10] sm:$0xff]
    %v1324 = vld [vmem:[%s51 + $0x18] sm:$0xff]
    %v1325 = vld [vmem:[%s53] sm:$0x1]
    %v1327 = vlaneseq
    %v1328 = vshrl.u32 %v1327, 7
    %v1329 = vsub.s32 0, %v1328
    %v1330 = vrot.slane %v1325, %v1329
    %v1333 = vsel %vm389, %v1320, 0
    %1335 = vmatprep.subr.mxu0 0.0
    %1336 = vmatpush1.msra.mxu0 %v1321
    %1337 = vmatprep.subr.mxu0 0.0
    %1338 = vmatpush1.msra.mxu0 %v1322
    %1339 = vmatprep.subr.mxu0 0.0
    %1340 = vmatpush1.msra.mxu0 %v1323
    %1341 = vmatprep.subr.mxu0 0.0
    %1342 = vmatpush1.msra.mxu0 %v1324
    %1343 = vmatprep.subr.mxu0 0.0
    %1344 = vmatpush1.msra.mxu0 0.0
    %1345 = vmatprep.subr.mxu0 0.0
    %1346 = vmatpush1.msra.mxu0 0.0
    %1347 = vmatprep.subr.mxu0 0.0
    %1348 = vmatpush1.msra.mxu0 0.0
    %1349 = vmatprep.subr.mxu0 0.0
    %1350 = vmatpush1.msra.mxu0 0.0
    %1351 = vmatprep.subr.mxu0 0.0
    %1352 = vmatpush1.msra.mxu0 0.0
    %1353 = vmatprep.subr.mxu0 0.0
    %1354 = vmatpush1.msra.mxu0 0.0
    %1355 = vmatprep.subr.mxu0 0.0
    %1356 = vmatpush1.msra.mxu0 0.0
    %1357 = vmatprep.subr.mxu0 0.0
    %1358 = vmatpush1.msra.mxu0 0.0
    %1359 = vmatprep.subr.mxu0 0.0
    %1360 = vmatpush1.msra.mxu0 0.0
    %1361 = vmatprep.subr.mxu0 0.0
    %1362 = vmatpush1.msra.mxu0 0.0
    %1363 = vmatprep.subr.mxu0 0.0
    %1364 = vmatpush1.msra.mxu0 0.0
    %1365 = vmatprep.subr.mxu0 0.0
    %1366 = vmatpush1.msra.mxu0 0.0
    %1367 = vmatprep.subr.mxu0 0.0
    %1368 = vmatpush1.msra.mxu0 0.0
    %1369 = vmatprep.subr.mxu0 0.0
    %1370 = vmatpush1.msra.mxu0 0.0
    %1371 = vmatprep.subr.mxu0 0.0
    %1372 = vmatpush1.msra.mxu0 0.0
    %1373 = vmatprep.subr.mxu0 0.0
    %1374 = vmatpush1.msra.mxu0 0.0
    %1375 = vmatprep.subr.mxu0 0.0
    %1376 = vmatpush1.msra.mxu0 0.0
    %1377 = vmatprep.subr.mxu0 0.0
    %1378 = vmatpush1.msra.mxu0 0.0
    %1379 = vmatprep.subr.mxu0 0.0
    %1380 = vmatpush1.msra.mxu0 0.0
    %1381 = vmatprep.subr.mxu0 0.0
    %1382 = vmatpush1.msra.mxu0 0.0
    %1383 = vmatprep.subr.mxu0 0.0
    %1384 = vmatpush1.msra.mxu0 0.0
    %1385 = vmatprep.subr.mxu0 0.0
    %1386 = vmatpush1.msra.mxu0 0.0
    %1387 = vmatprep.subr.mxu0 0.0
    %1388 = vmatpush1.msra.mxu0 0.0
    %1389 = vmatprep.subr.mxu0 0.0
    %1390 = vmatpush1.msra.mxu0 0.0
    %1391 = vmatprep.subr.mxu0 0.0
    %1392 = vmatpush1.msra.mxu0 0.0
    %1393 = vmatprep.subr.mxu0 0.0
    %1394 = vmatpush1.msra.mxu0 0.0
    %1395 = vmatprep.subr.mxu0 0.0
    %1396 = vmatpush1.msra.mxu0 0.0
    %1397 = vmatprep.subr.mxu0 0.0
    %1398 = vmatpush1.msra.mxu0 0.0
    %1399 = vmatprep.mubr.f32.mxu0 0.0
    %1400 = vmatmul.mubr.f32.gmra.mrb[0].mxu0 %v1333
    %v1401 = vpop.f32.mrb[0].mxu0
    %v1402 = vadd.f32 %v1330, %v1401
    %v1403 = vpop.f32.mrb[0].mxu0
    %1404 = vdwg.mxu0
    %v1405 = vld [vmem:[%s55] sm:$0xff]
    %v1406 = vld [vmem:[%s55 + $0x8] sm:$0xff]
    %v1407 = vld [vmem:[%s57] sm:$0x1]
    %v1409 = vlaneseq
    %v1410 = vshrl.u32 %v1409, 7
    %v1411 = vsub.s32 0, %v1410
    %v1412 = vrot.slane %v1407, %v1411
    %v1415 = vsel %vm303, %v1402, 0
    %1417 = vmatprep.subr.mxu0 0.0
    %1418 = vmatpush1.msra.mxu0 %v1405
    %1419 = vmatprep.subr.mxu0 0.0
    %1420 = vmatpush1.msra.mxu0 %v1406
    %1421 = vmatprep.subr.mxu0 0.0
    %1422 = vmatpush1.msra.mxu0 0.0
    %1423 = vmatprep.subr.mxu0 0.0
    %1424 = vmatpush1.msra.mxu0 0.0
    %1425 = vmatprep.subr.mxu0 0.0
    %1426 = vmatpush1.msra.mxu0 0.0
    %1427 = vmatprep.subr.mxu0 0.0
    %1428 = vmatpush1.msra.mxu0 0.0
    %1429 = vmatprep.subr.mxu0 0.0
    %1430 = vmatpush1.msra.mxu0 0.0
    %1431 = vmatprep.subr.mxu0 0.0
    %1432 = vmatpush1.msra.mxu0 0.0
    %1433 = vmatprep.subr.mxu0 0.0
    %1434 = vmatpush1.msra.mxu0 0.0
    %1435 = vmatprep.subr.mxu0 0.0
    %1436 = vmatpush1.msra.mxu0 0.0
    %1437 = vmatprep.subr.mxu0 0.0
    %1438 = vmatpush1.msra.mxu0 0.0
    %1439 = vmatprep.subr.mxu0 0.0
    %1440 = vmatpush1.msra.mxu0 0.0
    %1441 = vmatprep.subr.mxu0 0.0
    %1442 = vmatpush1.msra.mxu0 0.0
    %1443 = vmatprep.subr.mxu0 0.0
    %1444 = vmatpush1.msra.mxu0 0.0
    %1445 = vmatprep.subr.mxu0 0.0
    %1446 = vmatpush1.msra.mxu0 0.0
    %1447 = vmatprep.subr.mxu0 0.0
    %1448 = vmatpush1.msra.mxu0 0.0
    %1449 = vmatprep.subr.mxu0 0.0
    %1450 = vmatpush1.msra.mxu0 0.0
    %1451 = vmatprep.subr.mxu0 0.0
    %1452 = vmatpush1.msra.mxu0 0.0
    %1453 = vmatprep.subr.mxu0 0.0
    %1454 = vmatpush1.msra.mxu0 0.0
    %1455 = vmatprep.subr.mxu0 0.0
    %1456 = vmatpush1.msra.mxu0 0.0
    %1457 = vmatprep.subr.mxu0 0.0
    %1458 = vmatpush1.msra.mxu0 0.0
    %1459 = vmatprep.subr.mxu0 0.0
    %1460 = vmatpush1.msra.mxu0 0.0
    %1461 = vmatprep.subr.mxu0 0.0
    %1462 = vmatpush1.msra.mxu0 0.0
    %1463 = vmatprep.subr.mxu0 0.0
    %1464 = vmatpush1.msra.mxu0 0.0
    %1465 = vmatprep.subr.mxu0 0.0
    %1466 = vmatpush1.msra.mxu0 0.0
    %1467 = vmatprep.subr.mxu0 0.0
    %1468 = vmatpush1.msra.mxu0 0.0
    %1469 = vmatprep.subr.mxu0 0.0
    %1470 = vmatpush1.msra.mxu0 0.0
    %1471 = vmatprep.subr.mxu0 0.0
    %1472 = vmatpush1.msra.mxu0 0.0
    %1473 = vmatprep.subr.mxu0 0.0
    %1474 = vmatpush1.msra.mxu0 0.0
    %1475 = vmatprep.subr.mxu0 0.0
    %1476 = vmatpush1.msra.mxu0 0.0
    %1477 = vmatprep.subr.mxu0 0.0
    %1478 = vmatpush1.msra.mxu0 0.0
    %1479 = vmatprep.subr.mxu0 0.0
    %1480 = vmatpush1.msra.mxu0 0.0
    %1481 = vmatprep.mubr.f32.mxu0 0.0
    %1482 = vmatmul.mubr.f32.gmra.mrb[0].mxu0 %v1415
    %v1483 = vpop.f32.mrb[0].mxu0
    %v1484 = vadd.f32 %v1412, %v1483
    %v1485 = vpop.f32.mrb[0].mxu0
    %1486 = vdwg.mxu0
    %v1487 = vmax.f32 %v1484, 0.0
    %v1488 = vld [vmem:[%s59] sm:$0xff]
    %v1489 = vld [vmem:[%s59 + $0x8] sm:$0xff]
    %v1490 = vld [vmem:[%s59 + $0x10] sm:$0xff]
    %v1491 = vld [vmem:[%s59 + $0x18] sm:$0xff]
    %v1492 = vld [vmem:[%s61] sm:$0x1]
    %v1494 = vlaneseq
    %v1495 = vshrl.u32 %v1494, 7
    %v1496 = vsub.s32 0, %v1495
    %v1497 = vrot.slane %v1492, %v1496
    %v1500 = vsel %vm389, %v1487, 0
    %1502 = vmatprep.subr.mxu0 0.0
    %1503 = vmatpush1.msra.mxu0 %v1488
    %1504 = vmatprep.subr.mxu0 0.0
    %1505 = vmatpush1.msra.mxu0 %v1489
    %1506 = vmatprep.subr.mxu0 0.0
    %1507 = vmatpush1.msra.mxu0 %v1490
    %1508 = vmatprep.subr.mxu0 0.0
    %1509 = vmatpush1.msra.mxu0 %v1491
    %1510 = vmatprep.subr.mxu0 0.0
    %1511 = vmatpush1.msra.mxu0 0.0
    %1512 = vmatprep.subr.mxu0 0.0
    %1513 = vmatpush1.msra.mxu0 0.0
    %1514 = vmatprep.subr.mxu0 0.0
    %1515 = vmatpush1.msra.mxu0 0.0
    %1516 = vmatprep.subr.mxu0 0.0
    %1517 = vmatpush1.msra.mxu0 0.0
    %1518 = vmatprep.subr.mxu0 0.0
    %1519 = vmatpush1.msra.mxu0 0.0
    %1520 = vmatprep.subr.mxu0 0.0
    %1521 = vmatpush1.msra.mxu0 0.0
    %1522 = vmatprep.subr.mxu0 0.0
    %1523 = vmatpush1.msra.mxu0 0.0
    %1524 = vmatprep.subr.mxu0 0.0
    %1525 = vmatpush1.msra.mxu0 0.0
    %1526 = vmatprep.subr.mxu0 0.0
    %1527 = vmatpush1.msra.mxu0 0.0
    %1528 = vmatprep.subr.mxu0 0.0
    %1529 = vmatpush1.msra.mxu0 0.0
    %1530 = vmatprep.subr.mxu0 0.0
    %1531 = vmatpush1.msra.mxu0 0.0
    %1532 = vmatprep.subr.mxu0 0.0
    %1533 = vmatpush1.msra.mxu0 0.0
    %1534 = vmatprep.subr.mxu0 0.0
    %1535 = vmatpush1.msra.mxu0 0.0
    %1536 = vmatprep.subr.mxu0 0.0
    %1537 = vmatpush1.msra.mxu0 0.0
    %1538 = vmatprep.subr.mxu0 0.0
    %1539 = vmatpush1.msra.mxu0 0.0
    %1540 = vmatprep.subr.mxu0 0.0
    %1541 = vmatpush1.msra.mxu0 0.0
    %1542 = vmatprep.subr.mxu0 0.0
    %1543 = vmatpush1.msra.mxu0 0.0
    %1544 = vmatprep.subr.mxu0 0.0
    %1545 = vmatpush1.msra.mxu0 0.0
    %1546 = vmatprep.subr.mxu0 0.0
    %1547 = vmatpush1.msra.mxu0 0.0
    %1548 = vmatprep.subr.mxu0 0.0
    %1549 = vmatpush1.msra.mxu0 0.0
    %1550 = vmatprep.subr.mxu0 0.0
    %1551 = vmatpush1.msra.mxu0 0.0
    %1552 = vmatprep.subr.mxu0 0.0
    %1553 = vmatpush1.msra.mxu0 0.0
    %1554 = vmatprep.subr.mxu0 0.0
    %1555 = vmatpush1.msra.mxu0 0.0
    %1556 = vmatprep.subr.mxu0 0.0
    %1557 = vmatpush1.msra.mxu0 0.0
    %1558 = vmatprep.subr.mxu0 0.0
    %1559 = vmatpush1.msra.mxu0 0.0
    %1560 = vmatprep.subr.mxu0 0.0
    %1561 = vmatpush1.msra.mxu0 0.0
    %1562 = vmatprep.subr.mxu0 0.0
    %1563 = vmatpush1.msra.mxu0 0.0
    %1564 = vmatprep.subr.mxu0 0.0
    %1565 = vmatpush1.msra.mxu0 0.0
    %1566 = vmatprep.mubr.f32.mxu0 0.0
    %1567 = vmatmul.mubr.f32.gmra.mrb[0].mxu0 %v1500
    %v1568 = vpop.f32.mrb[0].mxu0
    %v1569 = vadd.f32 %v1497, %v1568
    %v1570 = vpop.f32.mrb[0].mxu0
    %1571 = vdwg.mxu0
    %vm1572 = vcmask 238592
    %1573 = vst.msk [vmem:[#allocation18] sm:$0x3] %vm1572, %v1569
    %v1574 = vld [vmem:[%s63] sm:$0xff]
    %v1575 = vld [vmem:[%s63 + $0x8] sm:$0xff]
    %v1576 = vld [vmem:[%s65] sm:$0x1]
    %v1578 = vlaneseq
    %v1579 = vshrl.u32 %v1578, 7
    %v1580 = vsub.s32 0, %v1579
    %v1581 = vrot.slane %v1576, %v1580
    %1583 = vmatprep.subr.mxu0 0.0
    %1584 = vmatpush1.msra.mxu0 %v1574
    %1585 = vmatprep.subr.mxu0 0.0
    %1586 = vmatpush1.msra.mxu0 %v1575
    %1587 = vmatprep.subr.mxu0 0.0
    %1588 = vmatpush1.msra.mxu0 0.0
    %1589 = vmatprep.subr.mxu0 0.0
    %1590 = vmatpush1.msra.mxu0 0.0
    %1591 = vmatprep.subr.mxu0 0.0
    %1592 = vmatpush1.msra.mxu0 0.0
    %1593 = vmatprep.subr.mxu0 0.0
    %1594 = vmatpush1.msra.mxu0 0.0
    %1595 = vmatprep.subr.mxu0 0.0
    %1596 = vmatpush1.msra.mxu0 0.0
    %1597 = vmatprep.subr.mxu0 0.0
    %1598 = vmatpush1.msra.mxu0 0.0
    %1599 = vmatprep.subr.mxu0 0.0
    %1600 = vmatpush1.msra.mxu0 0.0
    %1601 = vmatprep.subr.mxu0 0.0
    %1602 = vmatpush1.msra.mxu0 0.0
    %1603 = vmatprep.subr.mxu0 0.0
    %1604 = vmatpush1.msra.mxu0 0.0
    %1605 = vmatprep.subr.mxu0 0.0
    %1606 = vmatpush1.msra.mxu0 0.0
    %1607 = vmatprep.subr.mxu0 0.0
    %1608 = vmatpush1.msra.mxu0 0.0
    %1609 = vmatprep.subr.mxu0 0.0
    %1610 = vmatpush1.msra.mxu0 0.0
    %1611 = vmatprep.subr.mxu0 0.0
    %1612 = vmatpush1.msra.mxu0 0.0
    %1613 = vmatprep.subr.mxu0 0.0
    %1614 = vmatpush1.msra.mxu0 0.0
    %1615 = vmatprep.subr.mxu0 0.0
    %1616 = vmatpush1.msra.mxu0 0.0
    %1617 = vmatprep.subr.mxu0 0.0
    %1618 = vmatpush1.msra.mxu0 0.0
    %1619 = vmatprep.subr.mxu0 0.0
    %1620 = vmatpush1.msra.mxu0 0.0
    %1621 = vmatprep.subr.mxu0 0.0
    %1622 = vmatpush1.msra.mxu0 0.0
    %1623 = vmatprep.subr.mxu0 0.0
    %1624 = vmatpush1.msra.mxu0 0.0
    %1625 = vmatprep.subr.mxu0 0.0
    %1626 = vmatpush1.msra.mxu0 0.0
    %1627 = vmatprep.subr.mxu0 0.0
    %1628 = vmatpush1.msra.mxu0 0.0
    %1629 = vmatprep.subr.mxu0 0.0
    %1630 = vmatpush1.msra.mxu0 0.0
    %1631 = vmatprep.subr.mxu0 0.0
    %1632 = vmatpush1.msra.mxu0 0.0
    %1633 = vmatprep.subr.mxu0 0.0
    %1634 = vmatpush1.msra.mxu0 0.0
    %1635 = vmatprep.subr.mxu0 0.0
    %1636 = vmatpush1.msra.mxu0 0.0
    %1637 = vmatprep.subr.mxu0 0.0
    %1638 = vmatpush1.msra.mxu0 0.0
    %1639 = vmatprep.subr.mxu0 0.0
    %1640 = vmatpush1.msra.mxu0 0.0
    %1641 = vmatprep.subr.mxu0 0.0
    %1642 = vmatpush1.msra.mxu0 0.0
    %1643 = vmatprep.subr.mxu0 0.0
    %1644 = vmatpush1.msra.mxu0 0.0
    %1645 = vmatprep.subr.mxu0 0.0
    %1646 = vmatpush1.msra.mxu0 0.0
    %1647 = vmatprep.mubr.f32.mxu0 0.0
    %1648 = vmatmul.mubr.f32.gmra.mrb[0].mxu0 %v1415
    %v1649 = vpop.f32.mrb[0].mxu0
    %v1650 = vadd.f32 %v1581, %v1649
    %v1651 = vpop.f32.mrb[0].mxu0
    %1652 = vdwg.mxu0
    %v1653 = vmax.f32 %v1650, 0.0
    %v1654 = vld [vmem:[%s67] sm:$0xff]
    %v1655 = vld [vmem:[%s67 + $0x8] sm:$0xff]
    %v1656 = vld [vmem:[%s67 + $0x10] sm:$0xff]
    %v1657 = vld [vmem:[%s67 + $0x18] sm:$0xff]
    %v1658 = vld [vmem:[%s69] sm:$0x1]
    %v1660 = vlaneseq
    %v1661 = vshrl.u32 %v1660, 7
    %v1662 = vsub.s32 0, %v1661
    %v1663 = vrot.slane %v1658, %v1662
    %v1666 = vsel %vm389, %v1653, 0
    %1668 = vmatprep.subr.mxu0 0.0
    %1669 = vmatpush1.msra.mxu0 %v1654
    %1670 = vmatprep.subr.mxu0 0.0
    %1671 = vmatpush1.msra.mxu0 %v1655
    %1672 = vmatprep.subr.mxu0 0.0
    %1673 = vmatpush1.msra.mxu0 %v1656
    %1674 = vmatprep.subr.mxu0 0.0
    %1675 = vmatpush1.msra.mxu0 %v1657
    %1676 = vmatprep.subr.mxu0 0.0
    %1677 = vmatpush1.msra.mxu0 0.0
    %1678 = vmatprep.subr.mxu0 0.0
    %1679 = vmatpush1.msra.mxu0 0.0
    %1680 = vmatprep.subr.mxu0 0.0
    %1681 = vmatpush1.msra.mxu0 0.0
    %1682 = vmatprep.subr.mxu0 0.0
    %1683 = vmatpush1.msra.mxu0 0.0
    %1684 = vmatprep.subr.mxu0 0.0
    %1685 = vmatpush1.msra.mxu0 0.0
    %1686 = vmatprep.subr.mxu0 0.0
    %1687 = vmatpush1.msra.mxu0 0.0
    %1688 = vmatprep.subr.mxu0 0.0
    %1689 = vmatpush1.msra.mxu0 0.0
    %1690 = vmatprep.subr.mxu0 0.0
    %1691 = vmatpush1.msra.mxu0 0.0
    %1692 = vmatprep.subr.mxu0 0.0
    %1693 = vmatpush1.msra.mxu0 0.0
    %1694 = vmatprep.subr.mxu0 0.0
    %1695 = vmatpush1.msra.mxu0 0.0
    %1696 = vmatprep.subr.mxu0 0.0
    %1697 = vmatpush1.msra.mxu0 0.0
    %1698 = vmatprep.subr.mxu0 0.0
    %1699 = vmatpush1.msra.mxu0 0.0
    %1700 = vmatprep.subr.mxu0 0.0
    %1701 = vmatpush1.msra.mxu0 0.0
    %1702 = vmatprep.subr.mxu0 0.0
    %1703 = vmatpush1.msra.mxu0 0.0
    %1704 = vmatprep.subr.mxu0 0.0
    %1705 = vmatpush1.msra.mxu0 0.0
    %1706 = vmatprep.subr.mxu0 0.0
    %1707 = vmatpush1.msra.mxu0 0.0
    %1708 = vmatprep.subr.mxu0 0.0
    %1709 = vmatpush1.msra.mxu0 0.0
    %1710 = vmatprep.subr.mxu0 0.0
    %1711 = vmatpush1.msra.mxu0 0.0
    %1712 = vmatprep.subr.mxu0 0.0
    %1713 = vmatpush1.msra.mxu0 0.0
    %1714 = vmatprep.subr.mxu0 0.0
    %1715 = vmatpush1.msra.mxu0 0.0
    %1716 = vmatprep.subr.mxu0 0.0
    %1717 = vmatpush1.msra.mxu0 0.0
    %1718 = vmatprep.subr.mxu0 0.0
    %1719 = vmatpush1.msra.mxu0 0.0
    %1720 = vmatprep.subr.mxu0 0.0
    %1721 = vmatpush1.msra.mxu0 0.0
    %1722 = vmatprep.subr.mxu0 0.0
    %1723 = vmatpush1.msra.mxu0 0.0
    %1724 = vmatprep.subr.mxu0 0.0
    %1725 = vmatpush1.msra.mxu0 0.0
    %1726 = vmatprep.subr.mxu0 0.0
    %1727 = vmatpush1.msra.mxu0 0.0
    %1728 = vmatprep.subr.mxu0 0.0
    %1729 = vmatpush1.msra.mxu0 0.0
    %1730 = vmatprep.subr.mxu0 0.0
    %1731 = vmatpush1.msra.mxu0 0.0
    %1732 = vmatprep.mubr.f32.mxu0 0.0
    %1733 = vmatmul.mubr.f32.gmra.mrb[0].mxu0 %v1666
    %v1734 = vpop.f32.mrb[0].mxu0
    %v1735 = vadd.f32 %v1663, %v1734
    %v1736 = vpop.f32.mrb[0].mxu0
    %1737 = vdwg.mxu0
    %v1738 = vld [vmem:[%s71] sm:$0xff]
    %v1739 = vld [vmem:[%s73] sm:$0x1]
    %v1741 = vlaneseq
    %v1742 = vshrl.u32 %v1741, 7
    %v1743 = vsub.s32 0, %v1742
    %v1744 = vrot.slane %v1739, %v1743
    %v1747 = vsel %vm1246, %v1735, 0
    %1749 = vmatprep.subr.mxu0 0.0
    %1750 = vmatpush1.msra.mxu0 %v1738
    %1751 = vmatprep.subr.mxu0 0.0
    %1752 = vmatpush1.msra.mxu0 0.0
    %1753 = vmatprep.subr.mxu0 0.0
    %1754 = vmatpush1.msra.mxu0 0.0
    %1755 = vmatprep.subr.mxu0 0.0
    %1756 = vmatpush1.msra.mxu0 0.0
    %1757 = vmatprep.subr.mxu0 0.0
    %1758 = vmatpush1.msra.mxu0 0.0
    %1759 = vmatprep.subr.mxu0 0.0
    %1760 = vmatpush1.msra.mxu0 0.0
    %1761 = vmatprep.subr.mxu0 0.0
    %1762 = vmatpush1.msra.mxu0 0.0
    %1763 = vmatprep.subr.mxu0 0.0
    %1764 = vmatpush1.msra.mxu0 0.0
    %1765 = vmatprep.subr.mxu0 0.0
    %1766 = vmatpush1.msra.mxu0 0.0
    %1767 = vmatprep.subr.mxu0 0.0
    %1768 = vmatpush1.msra.mxu0 0.0
    %1769 = vmatprep.subr.mxu0 0.0
    %1770 = vmatpush1.msra.mxu0 0.0
    %1771 = vmatprep.subr.mxu0 0.0
    %1772 = vmatpush1.msra.mxu0 0.0
    %1773 = vmatprep.subr.mxu0 0.0
    %1774 = vmatpush1.msra.mxu0 0.0
    %1775 = vmatprep.subr.mxu0 0.0
    %1776 = vmatpush1.msra.mxu0 0.0
    %1777 = vmatprep.subr.mxu0 0.0
    %1778 = vmatpush1.msra.mxu0 0.0
    %1779 = vmatprep.subr.mxu0 0.0
    %1780 = vmatpush1.msra.mxu0 0.0
    %1781 = vmatprep.subr.mxu0 0.0
    %1782 = vmatpush1.msra.mxu0 0.0
    %1783 = vmatprep.subr.mxu0 0.0
    %1784 = vmatpush1.msra.mxu0 0.0
    %1785 = vmatprep.subr.mxu0 0.0
    %1786 = vmatpush1.msra.mxu0 0.0
    %1787 = vmatprep.subr.mxu0 0.0
    %1788 = vmatpush1.msra.mxu0 0.0
    %1789 = vmatprep.subr.mxu0 0.0
    %1790 = vmatpush1.msra.mxu0 0.0
    %1791 = vmatprep.subr.mxu0 0.0
    %1792 = vmatpush1.msra.mxu0 0.0
    %1793 = vmatprep.subr.mxu0 0.0
    %1794 = vmatpush1.msra.mxu0 0.0
    %1795 = vmatprep.subr.mxu0 0.0
    %1796 = vmatpush1.msra.mxu0 0.0
    %1797 = vmatprep.subr.mxu0 0.0
    %1798 = vmatpush1.msra.mxu0 0.0
    %1799 = vmatprep.subr.mxu0 0.0
    %1800 = vmatpush1.msra.mxu0 0.0
    %1801 = vmatprep.subr.mxu0 0.0
    %1802 = vmatpush1.msra.mxu0 0.0
    %1803 = vmatprep.subr.mxu0 0.0
    %1804 = vmatpush1.msra.mxu0 0.0
    %1805 = vmatprep.subr.mxu0 0.0
    %1806 = vmatpush1.msra.mxu0 0.0
    %1807 = vmatprep.subr.mxu0 0.0
    %1808 = vmatpush1.msra.mxu0 0.0
    %1809 = vmatprep.subr.mxu0 0.0
    %1810 = vmatpush1.msra.mxu0 0.0
    %1811 = vmatprep.subr.mxu0 0.0
    %1812 = vmatpush1.msra.mxu0 0.0
    %1813 = vmatprep.mubr.f32.mxu0 0.0
    %1814 = vmatmul.mubr.f32.gmra.mrb[0].mxu0 %v1747
    %v1815 = vpop.f32.mrb[0].mxu0
    %v1816 = vadd.f32 %v1744, %v1815
    %v1817 = vpop.f32.mrb[0].mxu0
    %1818 = vdwg.mxu0
    %v1819 = vmax.f32 %v1816, 0.0
    %v1820 = vld [vmem:[%s75] sm:$0xff]
    %v1821 = vld [vmem:[%s75 + $0x8] sm:$0xff]
    %v1822 = vld [vmem:[%s75 + $0x10] sm:$0xff]
    %v1823 = vld [vmem:[%s75 + $0x18] sm:$0xff]
    %v1824 = vld [vmem:[%s75 + $0x20] sm:$0xff]
    %v1825 = vld [vmem:[%s75 + $0x28] sm:$0xff]
    %v1826 = vld [vmem:[%s75 + $0x30] sm:$0xff]
    %v1827 = vld [vmem:[%s75 + $0x38] sm:$0xff]
    %v1828 = vld [vmem:[%s75 + $0x40] sm:$0xff]
    %v1829 = vld [vmem:[%s75 + $0x48] sm:$0xff]
    %v1830 = vld [vmem:[%s75 + $0x50] sm:$0xff]
    %v1831 = vld [vmem:[%s75 + $0x58] sm:$0xff]
    %v1832 = vld [vmem:[%s75 + $0x60] sm:$0xff]
    %v1833 = vld [vmem:[%s75 + $0x68] sm:$0xff]
    %v1834 = vld [vmem:[%s75 + $0x70] sm:$0xff]
    %v1835 = vld [vmem:[%s75 + $0x78] sm:$0xff]
    %v1836 = vld [vmem:[%s77] sm:$0x1]
    %v1838 = vlaneseq
    %v1839 = vshrl.u32 %v1838, 7
    %v1840 = vsub.s32 0, %v1839
    %v1841 = vrot.slane %v1836, %v1840
    %1843 = vmatprep.subr.mxu0 0.0
    %1844 = vmatpush1.msra.mxu0 %v1820
    %1845 = vmatprep.subr.mxu0 0.0
    %1846 = vmatpush1.msra.mxu0 %v1821
    %1847 = vmatprep.subr.mxu0 0.0
    %1848 = vmatpush1.msra.mxu0 %v1822
    %1849 = vmatprep.subr.mxu0 0.0
    %1850 = vmatpush1.msra.mxu0 %v1823
    %1851 = vmatprep.subr.mxu0 0.0
    %1852 = vmatpush1.msra.mxu0 %v1824
    %1853 = vmatprep.subr.mxu0 0.0
    %1854 = vmatpush1.msra.mxu0 %v1825
    %1855 = vmatprep.subr.mxu0 0.0
    %1856 = vmatpush1.msra.mxu0 %v1826
    %1857 = vmatprep.subr.mxu0 0.0
    %1858 = vmatpush1.msra.mxu0 %v1827
    %1859 = vmatprep.subr.mxu0 0.0
    %1860 = vmatpush1.msra.mxu0 %v1828
    %1861 = vmatprep.subr.mxu0 0.0
    %1862 = vmatpush1.msra.mxu0 %v1829
    %1863 = vmatprep.subr.mxu0 0.0
    %1864 = vmatpush1.msra.mxu0 %v1830
    %1865 = vmatprep.subr.mxu0 0.0
    %1866 = vmatpush1.msra.mxu0 %v1831
    %1867 = vmatprep.subr.mxu0 0.0
    %1868 = vmatpush1.msra.mxu0 %v1832
    %1869 = vmatprep.subr.mxu0 0.0
    %1870 = vmatpush1.msra.mxu0 %v1833
    %1871 = vmatprep.subr.mxu0 0.0
    %1872 = vmatpush1.msra.mxu0 %v1834
    %1873 = vmatprep.subr.mxu0 0.0
    %1874 = vmatpush1.msra.mxu0 %v1835
    %1875 = vmatprep.subr.mxu0 0.0
    %1876 = vmatpush1.msra.mxu0 0.0
    %1877 = vmatprep.subr.mxu0 0.0
    %1878 = vmatpush1.msra.mxu0 0.0
    %1879 = vmatprep.subr.mxu0 0.0
    %1880 = vmatpush1.msra.mxu0 0.0
    %1881 = vmatprep.subr.mxu0 0.0
    %1882 = vmatpush1.msra.mxu0 0.0
    %1883 = vmatprep.subr.mxu0 0.0
    %1884 = vmatpush1.msra.mxu0 0.0
    %1885 = vmatprep.subr.mxu0 0.0
    %1886 = vmatpush1.msra.mxu0 0.0
    %1887 = vmatprep.subr.mxu0 0.0
    %1888 = vmatpush1.msra.mxu0 0.0
    %1889 = vmatprep.subr.mxu0 0.0
    %1890 = vmatpush1.msra.mxu0 0.0
    %1891 = vmatprep.subr.mxu0 0.0
    %1892 = vmatpush1.msra.mxu0 0.0
    %1893 = vmatprep.subr.mxu0 0.0
    %1894 = vmatpush1.msra.mxu0 0.0
    %1895 = vmatprep.subr.mxu0 0.0
    %1896 = vmatpush1.msra.mxu0 0.0
    %1897 = vmatprep.subr.mxu0 0.0
    %1898 = vmatpush1.msra.mxu0 0.0
    %1899 = vmatprep.subr.mxu0 0.0
    %1900 = vmatpush1.msra.mxu0 0.0
    %1901 = vmatprep.subr.mxu0 0.0
    %1902 = vmatpush1.msra.mxu0 0.0
    %1903 = vmatprep.subr.mxu0 0.0
    %1904 = vmatpush1.msra.mxu0 0.0
    %1905 = vmatprep.subr.mxu0 0.0
    %1906 = vmatpush1.msra.mxu0 0.0
    %1907 = vmatprep.mubr.f32.mxu0 0.0
    %1908 = vmatmul.mubr.f32.gmra.mrb[0].mxu0 %v1819
    %v1909 = vpop.f32.mrb[0].mxu0
    %v1910 = vadd.f32 %v1841, %v1909
    %v1911 = vpop.f32.mrb[0].mxu0
    %1912 = vdwg.mxu0
    %v1913 = vmax.f32 %v1910, 0.0
    %v1914 = vld [vmem:[%s79] sm:$0xff]
    %v1915 = vld [vmem:[%s79 + $0x8] sm:$0xff]
    %v1916 = vld [vmem:[%s79 + $0x10] sm:$0xff]
    %v1917 = vld [vmem:[%s79 + $0x18] sm:$0xff]
    %v1918 = vld [vmem:[%s79 + $0x20] sm:$0xff]
    %v1919 = vld [vmem:[%s79 + $0x28] sm:$0xff]
    %v1920 = vld [vmem:[%s79 + $0x30] sm:$0xff]
    %v1921 = vld [vmem:[%s79 + $0x38] sm:$0xff]
    %v1922 = vld [vmem:[%s79 + $0x40] sm:$0xff]
    %v1923 = vld [vmem:[%s79 + $0x48] sm:$0xff]
    %v1924 = vld [vmem:[%s79 + $0x50] sm:$0xff]
    %v1925 = vld [vmem:[%s79 + $0x58] sm:$0xff]
    %v1926 = vld [vmem:[%s79 + $0x60] sm:$0xff]
    %v1927 = vld [vmem:[%s79 + $0x68] sm:$0xff]
    %v1928 = vld [vmem:[%s79 + $0x70] sm:$0xff]
    %v1929 = vld [vmem:[%s79 + $0x78] sm:$0xff]
    %v1930 = vld [vmem:[%s81] sm:$0xff]
    %v1931 = vld [vmem:[%s81 + $0x8] sm:$0xff]
    %v1932 = vld [vmem:[%s81 + $0x10] sm:$0xff]
    %v1933 = vld [vmem:[%s81 + $0x18] sm:$0xff]
    %v1934 = vld [vmem:[%s81 + $0x20] sm:$0xff]
    %v1935 = vld [vmem:[%s81 + $0x28] sm:$0xff]
    %v1936 = vld [vmem:[%s81 + $0x30] sm:$0xff]
    %v1937 = vld [vmem:[%s81 + $0x38] sm:$0xff]
    %v1938 = vld [vmem:[%s83] sm:$0x1]
    %1939 = vmatprep.subr.mxu0 0.0
    %1940 = vmatpush1.msra.mxu0 %v1930
    %1941 = vmatprep.subr.mxu0 0.0
    %1942 = vmatpush1.msra.mxu0 %v1931
    %1943 = vmatprep.subr.mxu0 0.0
    %1944 = vmatpush1.msra.mxu0 %v1932
    %1945 = vmatprep.subr.mxu0 0.0
    %1946 = vmatpush1.msra.mxu0 %v1933
    %1947 = vmatprep.subr.mxu0 0.0
    %1948 = vmatpush1.msra.mxu0 %v1934
    %1949 = vmatprep.subr.mxu0 0.0
    %1950 = vmatpush1.msra.mxu0 %v1935
    %1951 = vmatprep.subr.mxu0 0.0
    %1952 = vmatpush1.msra.mxu0 %v1936
    %1953 = vmatprep.subr.mxu0 0.0
    %1954 = vmatpush1.msra.mxu0 %v1937
    %1955 = vmatprep.subr.mxu0 0.0
    %1956 = vmatpush1.msra.mxu0 0.0
    %1957 = vmatprep.subr.mxu0 0.0
    %1958 = vmatpush1.msra.mxu0 0.0
    %1959 = vmatprep.subr.mxu0 0.0
    %1960 = vmatpush1.msra.mxu0 0.0
    %1961 = vmatprep.subr.mxu0 0.0
    %1962 = vmatpush1.msra.mxu0 0.0
    %1963 = vmatprep.subr.mxu0 0.0
    %1964 = vmatpush1.msra.mxu0 0.0
    %1965 = vmatprep.subr.mxu0 0.0
    %1966 = vmatpush1.msra.mxu0 0.0
    %1967 = vmatprep.subr.mxu0 0.0
    %1968 = vmatpush1.msra.mxu0 0.0
    %1969 = vmatprep.subr.mxu0 0.0
    %1970 = vmatpush1.msra.mxu0 0.0
    %1971 = vmatprep.subr.mxu0 0.0
    %1972 = vmatpush1.msra.mxu0 0.0
    %1973 = vmatprep.subr.mxu0 0.0
    %1974 = vmatpush1.msra.mxu0 0.0
    %1975 = vmatprep.subr.mxu0 0.0
    %1976 = vmatpush1.msra.mxu0 0.0
    %1977 = vmatprep.subr.mxu0 0.0
    %1978 = vmatpush1.msra.mxu0 0.0
    %1979 = vmatprep.subr.mxu0 0.0
    %1980 = vmatpush1.msra.mxu0 0.0
    %1981 = vmatprep.subr.mxu0 0.0
    %1982 = vmatpush1.msra.mxu0 0.0
    %1983 = vmatprep.subr.mxu0 0.0
    %1984 = vmatpush1.msra.mxu0 0.0
    %1985 = vmatprep.subr.mxu0 0.0
    %1986 = vmatpush1.msra.mxu0 0.0
    %1987 = vmatprep.subr.mxu0 0.0
    %1988 = vmatpush1.msra.mxu0 0.0
    %1989 = vmatprep.subr.mxu0 0.0
    %1990 = vmatpush1.msra.mxu0 0.0
    %1991 = vmatprep.subr.mxu0 0.0
    %1992 = vmatpush1.msra.mxu0 0.0
    %1993 = vmatprep.subr.mxu0 0.0
    %1994 = vmatpush1.msra.mxu0 0.0
    %1995 = vmatprep.subr.mxu0 0.0
    %1996 = vmatpush1.msra.mxu0 0.0
    %1997 = vmatprep.subr.mxu0 0.0
    %1998 = vmatpush1.msra.mxu0 0.0
    %1999 = vmatprep.subr.mxu0 0.0
    %2000 = vmatpush1.msra.mxu0 0.0
    %2001 = vmatprep.subr.mxu0 0.0
    %2002 = vmatpush1.msra.mxu0 0.0
    %2003 = vmatprep.mubr.f32.mxu0 0.0
    %2004 = vmatmul.mubr.f32.gmra.mrb[0].mxu0 %v481
    %v2005 = vpop.f32.mrb[0].mxu0
    %v2006 = vadd.f32 0.0, %v2005
    %v2007 = vpop.f32.mrb[0].mxu0
    %2008 = vdwg.mxu0
    %2009 = vmatprep.subr.mxu0 0.0
    %2010 = vmatpush1.msra.mxu0 %v1914
    %2011 = vmatprep.subr.mxu0 0.0
    %2012 = vmatpush1.msra.mxu0 %v1915
    %2013 = vmatprep.subr.mxu0 0.0
    %2014 = vmatpush1.msra.mxu0 %v1916
    %2015 = vmatprep.subr.mxu0 0.0
    %2016 = vmatpush1.msra.mxu0 %v1917
    %2017 = vmatprep.subr.mxu0 0.0
    %2018 = vmatpush1.msra.mxu0 %v1918
    %2019 = vmatprep.subr.mxu0 0.0
    %2020 = vmatpush1.msra.mxu0 %v1919
    %2021 = vmatprep.subr.mxu0 0.0
    %2022 = vmatpush1.msra.mxu0 %v1920
    %2023 = vmatprep.subr.mxu0 0.0
    %2024 = vmatpush1.msra.mxu0 %v1921
    %2025 = vmatprep.subr.mxu0 0.0
    %2026 = vmatpush1.msra.mxu0 %v1922
    %2027 = vmatprep.subr.mxu0 0.0
    %2028 = vmatpush1.msra.mxu0 %v1923
    %2029 = vmatprep.subr.mxu0 0.0
    %2030 = vmatpush1.msra.mxu0 %v1924
    %2031 = vmatprep.subr.mxu0 0.0
    %2032 = vmatpush1.msra.mxu0 %v1925
    %2033 = vmatprep.subr.mxu0 0.0
    %2034 = vmatpush1.msra.mxu0 %v1926
    %2035 = vmatprep.subr.mxu0 0.0
    %2036 = vmatpush1.msra.mxu0 %v1927
    %2037 = vmatprep.subr.mxu0 0.0
    %2038 = vmatpush1.msra.mxu0 %v1928
    %2039 = vmatprep.subr.mxu0 0.0
    %2040 = vmatpush1.msra.mxu0 %v1929
    %2041 = vmatprep.subr.mxu0 0.0
    %2042 = vmatpush1.msra.mxu0 0.0
    %2043 = vmatprep.subr.mxu0 0.0
    %2044 = vmatpush1.msra.mxu0 0.0
    %2045 = vmatprep.subr.mxu0 0.0
    %2046 = vmatpush1.msra.mxu0 0.0
    %2047 = vmatprep.subr.mxu0 0.0
    %2048 = vmatpush1.msra.mxu0 0.0
    %2049 = vmatprep.subr.mxu0 0.0
    %2050 = vmatpush1.msra.mxu0 0.0
    %2051 = vmatprep.subr.mxu0 0.0
    %2052 = vmatpush1.msra.mxu0 0.0
    %2053 = vmatprep.subr.mxu0 0.0
    %2054 = vmatpush1.msra.mxu0 0.0
    %2055 = vmatprep.subr.mxu0 0.0
    %2056 = vmatpush1.msra.mxu0 0.0
    %2057 = vmatprep.subr.mxu0 0.0
    %2058 = vmatpush1.msra.mxu0 0.0
    %2059 = vmatprep.subr.mxu0 0.0
    %2060 = vmatpush1.msra.mxu0 0.0
    %2061 = vmatprep.subr.mxu0 0.0
    %2062 = vmatpush1.msra.mxu0 0.0
    %2063 = vmatprep.subr.mxu0 0.0
    %2064 = vmatpush1.msra.mxu0 0.0
    %2065 = vmatprep.subr.mxu0 0.0
    %2066 = vmatpush1.msra.mxu0 0.0
    %2067 = vmatprep.subr.mxu0 0.0
    %2068 = vmatpush1.msra.mxu0 0.0
    %2069 = vmatprep.subr.mxu0 0.0
    %2070 = vmatpush1.msra.mxu0 0.0
    %2071 = vmatprep.subr.mxu0 0.0
    %2072 = vmatpush1.msra.mxu0 0.0
    %2073 = vmatprep.mubr.f32.mxu0 0.0
    %2074 = vmatmul.mubr.f32.gmra.mrb[0].mxu0 %v1913
    %v2075 = vpop.f32.mrb[0].mxu0
    %v2076 = vadd.f32 %v2006, %v2075
    %v2077 = vpop.f32.mrb[0].mxu0
    %2078 = vdwg.mxu0
    %v2080 = vlaneseq
    %v2081 = vshrl.u32 %v2080, 7
    %v2082 = vsub.s32 0, %v2081
    %v2083 = vrot.slane %v1938, %v2082
    %v2085 = vadd.f32 %v2076, %v2083
    %v2086 = vmax.f32 %v2085, 0.0
    %v2087 = vld [vmem:[%s85] sm:$0xff]
    %v2088 = vld [vmem:[%s85 + $0x8] sm:$0xff]
    %v2089 = vld [vmem:[%s85 + $0x10] sm:$0xff]
    %v2090 = vld [vmem:[%s85 + $0x18] sm:$0xff]
    %v2091 = vld [vmem:[%s85 + $0x20] sm:$0xff]
    %v2092 = vld [vmem:[%s85 + $0x28] sm:$0xff]
    %v2093 = vld [vmem:[%s85 + $0x30] sm:$0xff]
    %v2094 = vld [vmem:[%s85 + $0x38] sm:$0xff]
    %v2095 = vld [vmem:[%s87] sm:$0x1]
    %v2097 = vlaneseq
    %v2098 = vshrl.u32 %v2097, 7
    %v2099 = vsub.s32 0, %v2098
    %v2100 = vrot.slane %v2095, %v2099
    %v2103 = vsel %vm479, %v2086, 0
    %2105 = vmatprep.subr.mxu0 0.0
    %2106 = vmatpush1.msra.mxu0 %v2087
    %2107 = vmatprep.subr.mxu0 0.0
    %2108 = vmatpush1.msra.mxu0 %v2088
    %2109 = vmatprep.subr.mxu0 0.0
    %2110 = vmatpush1.msra.mxu0 %v2089
    %2111 = vmatprep.subr.mxu0 0.0
    %2112 = vmatpush1.msra.mxu0 %v2090
    %2113 = vmatprep.subr.mxu0 0.0
    %2114 = vmatpush1.msra.mxu0 %v2091
    %2115 = vmatprep.subr.mxu0 0.0
    %2116 = vmatpush1.msra.mxu0 %v2092
    %2117 = vmatprep.subr.mxu0 0.0
    %2118 = vmatpush1.msra.mxu0 %v2093
    %2119 = vmatprep.subr.mxu0 0.0
    %2120 = vmatpush1.msra.mxu0 %v2094
    %2121 = vmatprep.subr.mxu0 0.0
    %2122 = vmatpush1.msra.mxu0 0.0
    %2123 = vmatprep.subr.mxu0 0.0
    %2124 = vmatpush1.msra.mxu0 0.0
    %2125 = vmatprep.subr.mxu0 0.0
    %2126 = vmatpush1.msra.mxu0 0.0
    %2127 = vmatprep.subr.mxu0 0.0
    %2128 = vmatpush1.msra.mxu0 0.0
    %2129 = vmatprep.subr.mxu0 0.0
    %2130 = vmatpush1.msra.mxu0 0.0
    %2131 = vmatprep.subr.mxu0 0.0
    %2132 = vmatpush1.msra.mxu0 0.0
    %2133 = vmatprep.subr.mxu0 0.0
    %2134 = vmatpush1.msra.mxu0 0.0
    %2135 = vmatprep.subr.mxu0 0.0
    %2136 = vmatpush1.msra.mxu0 0.0
    %2137 = vmatprep.subr.mxu0 0.0
    %2138 = vmatpush1.msra.mxu0 0.0
    %2139 = vmatprep.subr.mxu0 0.0
    %2140 = vmatpush1.msra.mxu0 0.0
    %2141 = vmatprep.subr.mxu0 0.0
    %2142 = vmatpush1.msra.mxu0 0.0
    %2143 = vmatprep.subr.mxu0 0.0
    %2144 = vmatpush1.msra.mxu0 0.0
    %2145 = vmatprep.subr.mxu0 0.0
    %2146 = vmatpush1.msra.mxu0 0.0
    %2147 = vmatprep.subr.mxu0 0.0
    %2148 = vmatpush1.msra.mxu0 0.0
    %2149 = vmatprep.subr.mxu0 0.0
    %2150 = vmatpush1.msra.mxu0 0.0
    %2151 = vmatprep.subr.mxu0 0.0
    %2152 = vmatpush1.msra.mxu0 0.0
    %2153 = vmatprep.subr.mxu0 0.0
    %2154 = vmatpush1.msra.mxu0 0.0
    %2155 = vmatprep.subr.mxu0 0.0
    %2156 = vmatpush1.msra.mxu0 0.0
    %2157 = vmatprep.subr.mxu0 0.0
    %2158 = vmatpush1.msra.mxu0 0.0
    %2159 = vmatprep.subr.mxu0 0.0
    %2160 = vmatpush1.msra.mxu0 0.0
    %2161 = vmatprep.subr.mxu0 0.0
    %2162 = vmatpush1.msra.mxu0 0.0
    %2163 = vmatprep.subr.mxu0 0.0
    %2164 = vmatpush1.msra.mxu0 0.0
    %2165 = vmatprep.subr.mxu0 0.0
    %2166 = vmatpush1.msra.mxu0 0.0
    %2167 = vmatprep.subr.mxu0 0.0
    %2168 = vmatpush1.msra.mxu0 0.0
    %2169 = vmatprep.mubr.f32.mxu0 0.0
    %2170 = vmatmul.mubr.f32.gmra.mrb[0].mxu0 %v2103
    %v2171 = vpop.f32.mrb[0].mxu0
    %v2172 = vadd.f32 %v2100, %v2171
    %v2173 = vpop.f32.mrb[0].mxu0
    %2174 = vdwg.mxu0
    %vm2175 = vcmask 123904
    %2176 = vst.msk [vmem:[#allocation17] sm:$0x3] %vm2175, %v2172
    // Predicated region
    $region214: #{tpu_custom_call.1} parent=1 // pred_check
      _
    $region215: #{tpu_custom_call.1} parent=1 // pred_check_branch
      %2178 = sbr.rel (0) target = $region217
    $region216: #{tpu_custom_call.1} parent=1 // pred_region
      %s2180 = ssub.s32 32, 32
      %2181 = vsyncadd [#allocation4], %s2180
      %s2183 = sshll.u32 [#allocation17], 4
      %s2184 = int_to_ptr.vmem [resolvable:$true] %s2183
      %2186 = dma.vmem_to_hbm [thread:$0]  %s2184, 32, %s89, [#allocation4]
    $region217: #{tpu_custom_call.1} parent=1 // pred_fallthru
      _
    // Predicated region
    $region218: #{tpu_custom_call.1} parent=1 // pred_check
      _
    $region219: #{tpu_custom_call.1} parent=1 // pred_check_branch
      %2188 = sbr.rel (0) target = $region221
    $region220: #{tpu_custom_call.1} parent=1 // pred_region
      %s2190 = ssub.s32 32, 32
      %2191 = vsyncadd [#allocation19], %s2190
      %s2193 = sshll.u32 [#allocation18], 4
      %s2194 = int_to_ptr.vmem [resolvable:$true] %s2193
      %2196 = dma.vmem_to_hbm [thread:$0]  %s2194, 32, %s91, [#allocation19]
    $region221: #{tpu_custom_call.1} parent=1 // pred_fallthru
      _
    // Predicated region
    $region222: #{tpu_custom_call.1} parent=1 // pred_check
      _
    $region223: #{tpu_custom_call.1} parent=1 // pred_check_branch
      %2198 = sbr.rel (0) target = $region225
    $region224: #{tpu_custom_call.1} parent=1 // pred_region
      %2199 = dma.done [#allocation4], 32
    $region225: #{tpu_custom_call.1} parent=1 // pred_fallthru
      _
    // Predicated region
    $region226: #{tpu_custom_call.1} parent=1 // pred_check
      _
    $region227: #{tpu_custom_call.1} parent=1 // pred_check_branch
      %2201 = sbr.rel (0) target = $region229
    $region228: #{tpu_custom_call.1} parent=1 // pred_region
      %2202 = dma.done [#allocation19], 32
    $region229: #{tpu_custom_call.1} parent=1 // pred_fallthru
      _
    %2203 = vsyncpa [#allocation3], 1
    %2204 = vsyncpa [#allocation6], 1
    %2205 = vsyncpa [#allocation9], 1
    %2206 = vsyncpa [#allocation12], 1
    %2207 = vsyncpa [#allocation15], 1
    %2208 = vsyncpa [#allocation4], 1
    %2209 = vsyncpa [#allocation19], 1

</llo_original>
